<compile_context>
chip_gen: v5e
topology: v5e:2x2
jax: 0.10.0
libtpu: 0.0.40
codegen_flags: <defaults>
</compile_context>

<pallas_src>
import functools

import jax
import jax.numpy as jnp
import numpy as np
from jax import lax
from jax.experimental import pallas as pl
from jax.experimental.pallas import tpu as pltpu


# ----------------------------------------------------------------------------- act
def act(x):
    """swish / SiLU.  approx reciprocal rides the EUP slot (free vs VALU Newton)."""
    if hasattr(pl, "reciprocal"):
        return x * pl.reciprocal(1.0 + jnp.exp(-x), approx=True)
    return x * jax.nn.sigmoid(x)


def _ref_act(x):
    return x * jax.nn.sigmoid(x)


# ------------------------------------------------------------------- Pallas kernel
def _dense_conv_kernel(x_ref, wmx_ref, bmx_ref, web_ref, out_ref, *, W, HW, num_ch):
    # x_ref:   (Cin_pad, L)  L = HW (one batch elem per grid step) or B*HW (folded)
    # wmx_ref: (num_ch+Cst, 9*Cin_pad) bf16   merged [base; energy-x] weight
    # bmx_ref: (num_ch+Cst, 1) f32            merged [base; energy]   bias
    # web_ref: (Cst, 9*num_ch) bf16           energy weight for the base_out part
    L = x_ref.shape[-1]
    x = x_ref[...]                                              # (Cin_pad, L) f32

    # --- per-tap zero-padding validity masks, built once (lane-indexed) ----------
    pidx = lax.broadcasted_iota(jnp.int32, (1, L), 1)           # global lane index
    s = pidx % HW                                               # spatial idx in elem
    col = s % W

    def tap_mask(dy, dx):
        off = (dy - 1) * W + (dx - 1)
        return ((s + off >= 0) & (s + off < HW)
                & (col + (dx - 1) >= 0) & (col + (dx - 1) < W))

    masks = [tap_mask(t // 3, t % 3) for t in range(9)]

    def shifted(v, t):
        # value of v at spatial position (y+dy-1, x+dx-1); zero outside == pad=1.
        # Roll wraps over the full lane extent; wrapped values are masked to zero
        # (s+off in [0,HW) also guarantees we never cross a batch boundary).
        dy, dx = t // 3, t % 3
        off = (dy - 1) * W + (dx - 1)
        r = v if off == 0 else pltpu.roll(v, shift=(-off) % L, axis=1)
        return jnp.where(masks[t], r, 0.0)

    def im2col_bf16(v):                                         # (C, L) -> (9C, L)
        # C is 8-aligned, so each tap is a whole-sublane-tile slab: cheap concat.
        return jnp.concatenate([shifted(v, t) for t in range(9)],
                               axis=0).astype(jnp.bfloat16)

    # --- merged dot: base conv rows + x-contribution of the energy conv ----------
    x9 = im2col_bf16(x)                                         # (9*Cin_pad, L)
    mx = jnp.dot(wmx_ref[...], x9,
                 preferred_element_type=jnp.float32) + bmx_ref[...]
    # x9 dead here; b9 built only after -> x9/b9 never live together.
    base = act(mx[:num_ch])                                     # (num_ch, L)

    # --- energy conv: add the base_out contribution (2nd and last MXU dot) -------
    b9 = im2col_bf16(base)                                      # (9*num_ch, L)
    e = mx[num_ch:] + jnp.dot(web_ref[...], b9,
                              preferred_element_type=jnp.float32)
    out_ref[...] = act(e)                                       # lane-dense store


# ------------------------------------------------------------------------ wrapper
def bilinear_resize_nchw(x, out_hw):
    """PyTorch F.interpolate(mode='bilinear', align_corners=False) on NCHW."""
    _, _, hin, win = x.shape
    hout, wout = out_hw

    def idx_w(n_out, n_in):
        c = (jnp.arange(n_out, dtype=jnp.float32) + 0.5) * (n_in / n_out) - 0.5
        c = jnp.clip(c, 0.0, n_in - 1)
        lo = jnp.floor(c).astype(jnp.int32)
        hi = jnp.minimum(lo + 1, n_in - 1)
        return lo, hi, c - lo.astype(jnp.float32)

    r_lo, r_hi, r_w = idx_w(hout, hin)
    c_lo, c_hi, c_w = idx_w(wout, win)
    rw = r_w[None, None, :, None]
    cw = c_w[None, None, None, :]
    rows = x[:, :, r_lo, :] * (1.0 - rw) + x[:, :, r_hi, :] * rw
    return rows[:, :, :, c_lo] * (1.0 - cw) + rows[:, :, :, c_hi] * cw


def _multi_tensorcore_chip():
    """grid=(B,) 'parallel' only pays off with >1 TensorCore per chip (v7x dual-TC,
    v4/v5p megacore).  On single-TC v5e/v6e we fold batch into the lane axis."""
    try:
        kind = jax.devices()[0].device_kind.lower()
    except Exception:
        return False
    return any(t in kind for t in ("v7", "7x", "v4", "v5p"))


def _dense_conv_pallas(x4_pad, wmx, bmx, web, *, B, Cst, H, W, num_ch, batch_grid):
    HW = H * W
    Cin_pad = x4_pad.shape[1]
    kern = functools.partial(_dense_conv_kernel, W=W, HW=HW, num_ch=num_ch)

    if batch_grid:
        # One batch element per TensorCore; weights broadcast (constant index_map).
        x_in = x4_pad.reshape(B, Cin_pad, HW)
        out = pl.pallas_call(
            kern,
            grid=(B,),
            in_specs=[
                pl.BlockSpec((None, Cin_pad, HW), lambda b: (b, 0, 0)),
                pl.BlockSpec((num_ch + Cst, 9 * Cin_pad), lambda b: (0, 0)),
                pl.BlockSpec((num_ch + Cst, 1), lambda b: (0, 0)),
                pl.BlockSpec((Cst, 9 * num_ch), lambda b: (0, 0)),
            ],
            out_specs=pl.BlockSpec((None, Cst, HW), lambda b: (b, 0, 0)),
            out_shape=jax.ShapeDtypeStruct((B, Cst, HW), jnp.float32),
            compiler_params=pltpu.CompilerParams(
                dimension_semantics=("parallel",)),
        )(x_in, wmx, bmx, web)
        return out.reshape(B, Cst, H, W)

    # Single-TC chips: fold batch into the lane axis -> one grid step, 512 lanes.
    x_in = jnp.swapaxes(x4_pad.reshape(B, Cin_pad, HW), 0, 1).reshape(Cin_pad, B * HW)
    out = pl.pallas_call(
        kern,
        grid=(1,),
        in_specs=[
            pl.BlockSpec((Cin_pad, B * HW), lambda i: (0, 0)),
            pl.BlockSpec((num_ch + Cst, 9 * Cin_pad), lambda i: (0, 0)),
            pl.BlockSpec((num_ch + Cst, 1), lambda i: (0, 0)),
            pl.BlockSpec((Cst, 9 * num_ch), lambda i: (0, 0)),
        ],
        out_specs=pl.BlockSpec((Cst, B * HW), lambda i: (0, 0)),
        out_shape=jax.ShapeDtypeStruct((Cst, B * HW), jnp.float32),
        compiler_params=pltpu.CompilerParams(
            dimension_semantics=("arbitrary",)),
    )(x_in, wmx, bmx, web)
    return jnp.swapaxes(out.reshape(Cst, B, HW), 0, 1).reshape(B, Cst, H, W)


def dense_conv_forward(pre_states, x4d, params, *, batch_grid):
    B, Cst, H, W = pre_states.shape

    # glue: bilinear-interp the input state to the layer spatial size (Interpolate)
    x4 = bilinear_resize_nchw(x4d, (H, W))                      # (B, Cin, H, W)
    Cin = x4.shape[1]
    Cin_pad = params["wmx"].shape[1] // 9
    num_ch = params["wmx"].shape[0] - Cst
    # zero-pad channels to the sublane-aligned width used by the kernel's im2col
    x4_pad = jnp.pad(x4, ((0, 0), (0, Cin_pad - Cin), (0, 0), (0, 0)))

    out = _dense_conv_pallas(x4_pad, params["wmx"], params["bmx"], params["web"],
                             B=B, Cst=Cst, H=H, W=W, num_ch=num_ch,
                             batch_grid=batch_grid)

    # quadr_out = 0.5 * <out, pre_states> per batch element (tiny; fused by XLA)
    quadr = 0.5 * jnp.einsum("bchw,bchw->b", out, pre_states)
    return quadr, out


# ------------------------------------------------------------------ params (glue)
def spectral_normalize(w, u, bound):
    """One power-iteration step, exactly as SpectralNorm.compute_weight."""
    wm = w.reshape(w.shape[0], -1)
    v = wm.T @ u
    v = v / jnp.linalg.norm(v)
    u2 = wm @ v
    u2 = u2 / jnp.linalg.norm(u2)
    sigma = u2 @ wm @ v
    if bound:
        return w / (sigma + 1e-6) * jnp.minimum(sigma, 1.0)
    return w / sigma


def conv_w_to_mat(w, cin_pad=None):
    """(O, I, 3, 3) -> (O, 9*Ipad); column index = (dy*3+dx)*Ipad + i (im2col order).
    Padded input channels get zero weight columns (matches zero-padded x)."""
    o, i = w.shape[0], w.shape[1]
    if cin_pad is not None and cin_pad > i:
        w = jnp.pad(w, ((0, 0), (0, cin_pad - i), (0, 0), (0, 0)))
        i = cin_pad
    return jnp.transpose(w, (2, 3, 1, 0)).reshape(9 * i, o).T


def make_params(key, Cin, Cst, num_ch):
    ks = jax.random.split(key, 4)
    # base_conv: Conv2d(Cin -> num_ch, 3x3), spectral_norm(std=1, bound=False), bias=0
    w_base = spectral_normalize(
        jax.random.normal(ks[0], (num_ch, Cin, 3, 3), jnp.float32),
        jax.random.normal(ks[1], (num_ch,), jnp.float32), bound=False)
    b_base = jnp.zeros((num_ch,), jnp.float32)
    # energy_conv: Conv2d(Cin+num_ch -> Cst, 3x3), spectral_norm(bound=True)
    # NOTE: the module initialises this weight with std=1e-10 (near-zero); we use
    # std=1.0 so the numerical check below is non-trivial — forward math is identical.
    w_en = spectral_normalize(
        jax.random.normal(ks[2], (Cst, Cin + num_ch, 3, 3), jnp.float32),
        jax.random.normal(ks[3], (Cst,), jnp.float32), bound=True)
    b_en = jnp.zeros((Cst,), jnp.float32)

    cin_pad = max(8, ((Cin + 7) // 8) * 8)                       # sublane-align taps
    wb = conv_w_to_mat(w_base, cin_pad)                          # (num_ch, 9*cin_pad)
    wex = conv_w_to_mat(w_en[:, :Cin], cin_pad)                  # (Cst,    9*cin_pad)
    web = conv_w_to_mat(w_en[:, Cin:])                           # (Cst,    9*num_ch)

    return dict(
        # kernel params: merged x-weight (base rows on top), bf16 MXU operands
        wmx=jnp.concatenate([wb, wex], axis=0).astype(jnp.bfloat16),
        bmx=jnp.concatenate([b_base, b_en]).reshape(num_ch + Cst, 1),
        web=web.astype(jnp.bfloat16),
        # torch-layout copies for the pure-JAX reference
        w_base=w_base, b_base=b_base, w_en=w_en, b_en=b_en,
    )


# ---------------------------------------------------------------- JAX reference
def reference_forward(pre_states, x4d, params):
    conv = lambda x, w: lax.conv_general_dilated(
        x, w, window_strides=(1, 1), padding=[(1, 1), (1, 1)],
        dimension_numbers=("NCHW", "OIHW", "NCHW"))
    _, _, H, W = pre_states.shape
    x4 = bilinear_resize_nchw(x4d, (H, W))
    base = _ref_act(conv(x4, params["w_base"]) + params["b_base"][None, :, None, None])
    e_in = jnp.concatenate([x4, base], axis=1)
    out = _ref_act(conv(e_in, params["w_en"]) + params["b_en"][None, :, None, None])
    quadr = 0.5 * jnp.einsum("bchw,bchw->b", out, pre_states)
    return quadr, out


# -------------------------------------------------------------------------- main
if __name__ == "__main__":
    B, Cst, H, W = 2, 4, 16, 16          # state_sizes[layer_idx] = [2, 4, 16, 16]
    Cin, Hin, Win = 3, 8, 8              # the connected input state = [2, 3, 8, 8]
    num_ch = 8                           # arch_dict['num_ch'] = 8

    key = jax.random.PRNGKey(0)
    k_pre, k_x4, k_par = jax.random.split(key, 3)
    pre_states = jax.random.normal(k_pre, (B, Cst, H, W), jnp.float32)
    x4d = jax.random.normal(k_x4, (B, Cin, Hin, Win), jnp.float32)   # 4-D input (NCHW)

    params = make_params(k_par, Cin, Cst, num_ch)

    batch_grid = _multi_tensorcore_chip()
    fwd = jax.jit(functools.partial(dense_conv_forward, batch_grid=batch_grid))

    quadr, out = fwd(pre_states, x4d, params)
    quadr = jax.block_until_ready(quadr)
    out = jax.block_until_ready(out)

    quadr_ref, out_ref = reference_forward(pre_states, x4d, params)
    np.testing.assert_allclose(np.asarray(out), np.asarray(out_ref),
                               rtol=5e-2, atol=3e-2)
    np.testing.assert_allclose(np.asarray(quadr), np.asarray(quadr_ref),
                               rtol=5e-2, atol=1e-1)
    assert quadr.shape == (B,) and out.shape == (B, Cst, H, W)

    print("KERNEL_OK")
</pallas_src>

<mosaic_0001>
module attributes {stable_mosaic.version = 11 : i64} {
  func.func @_dense_conv_kernel(%arg0: i32, %arg1: memref<8x512xf32, #tpu.memory_space<vmem>>, %arg2: memref<12x72xbf16, #tpu.memory_space<vmem>>, %arg3: memref<12x1xf32, #tpu.memory_space<vmem>>, %arg4: memref<4x72xbf16, #tpu.memory_space<vmem>>, %arg5: memref<4x512xf32, #tpu.memory_space<vmem>>) attributes {dimension_semantics = [#tpu.dimension_semantics<arbitrary>], iteration_bounds = array<i64: 1>, scalar_prefetch = 0 : i64, scratch_operands = 0 : i64, tpu.core_type = #tpu.core_type<tc>, window_params = [{pipeline_mode = #tpu.pipeline_mode<synchronous>, transform_indices = @transform_0, window_bounds = array<i64: 8, 512>}, {pipeline_mode = #tpu.pipeline_mode<synchronous>, transform_indices = @transform_1, window_bounds = array<i64: 12, 72>}, {pipeline_mode = #tpu.pipeline_mode<synchronous>, transform_indices = @transform_2, window_bounds = array<i64: 12, 1>}, {pipeline_mode = #tpu.pipeline_mode<synchronous>, transform_indices = @transform_3, window_bounds = array<i64: 4, 72>}, {pipeline_mode = #tpu.pipeline_mode<synchronous>, transform_indices = @transform_4, window_bounds = array<i64: 4, 512>}]} {
    %c0 = arith.constant 0 : index
    %c0_0 = arith.constant 0 : index
    %0 = vector.load %arg1[%c0, %c0_0] : memref<8x512xf32, #tpu.memory_space<vmem>>, vector<8x512xf32>
    %1 = tpu.iota {dimensions = array<i32: 1>} : vector<1x512xi32>
    %c256_i32 = arith.constant 256 : i32
    %c0_i32 = arith.constant 0 : i32
    %2 = arith.cmpi eq, %c256_i32, %c0_i32 : i32
    %c1_i32 = arith.constant 1 : i32
    %3 = arith.select %2, %c1_i32, %c256_i32 : i32
    %4 = vector.broadcast %3 : i32 to vector<1x512xi32>
    %5 = arith.remsi %1, %4 : vector<1x512xi32>
    %c0_i32_1 = arith.constant 0 : i32
    %6 = vector.broadcast %c0_i32_1 : i32 to vector<1x512xi32>
    %7 = arith.cmpi ne, %5, %6 : vector<1x512xi32>
    %c0_i32_2 = arith.constant 0 : i32
    %8 = vector.broadcast %c0_i32_2 : i32 to vector<1x512xi32>
    %9 = arith.cmpi slt, %5, %8 : vector<1x512xi32>
    %c0_i32_3 = arith.constant 0 : i32
    %10 = arith.cmpi slt, %3, %c0_i32_3 : i32
    %11 = vector.broadcast %10 : i1 to vector<1x512xi1>
    %12 = vector.broadcast %11 : vector<1x512xi1> to vector<1x512xi1>
    %13 = arith.xori %9, %12 : vector<1x512xi1>
    %14 = arith.andi %13, %7 : vector<1x512xi1>
    %15 = vector.broadcast %3 : i32 to vector<1x512xi32>
    %16 = arith.addi %5, %15 : vector<1x512xi32>
    %17 = arith.select %14, %16, %5 : vector<1x512xi1>, vector<1x512xi32>
    %c16_i32 = arith.constant 16 : i32
    %c0_i32_4 = arith.constant 0 : i32
    %18 = arith.cmpi eq, %c16_i32, %c0_i32_4 : i32
    %c1_i32_5 = arith.constant 1 : i32
    %19 = arith.select %18, %c1_i32_5, %c16_i32 : i32
    %20 = vector.broadcast %19 : i32 to vector<1x512xi32>
    %21 = arith.remsi %17, %20 : vector<1x512xi32>
    %c0_i32_6 = arith.constant 0 : i32
    %22 = vector.broadcast %c0_i32_6 : i32 to vector<1x512xi32>
    %23 = arith.cmpi ne, %21, %22 : vector<1x512xi32>
    %c0_i32_7 = arith.constant 0 : i32
    %24 = vector.broadcast %c0_i32_7 : i32 to vector<1x512xi32>
    %25 = arith.cmpi slt, %21, %24 : vector<1x512xi32>
    %c0_i32_8 = arith.constant 0 : i32
    %26 = arith.cmpi slt, %19, %c0_i32_8 : i32
    %27 = vector.broadcast %26 : i1 to vector<1x512xi1>
    %28 = vector.broadcast %27 : vector<1x512xi1> to vector<1x512xi1>
    %29 = arith.xori %25, %28 : vector<1x512xi1>
    %30 = arith.andi %29, %23 : vector<1x512xi1>
    %31 = vector.broadcast %19 : i32 to vector<1x512xi32>
    %32 = arith.addi %21, %31 : vector<1x512xi32>
    %33 = arith.select %30, %32, %21 : vector<1x512xi1>, vector<1x512xi32>
    %c-17_i32 = arith.constant -17 : i32
    %34 = vector.broadcast %c-17_i32 : i32 to vector<1x512xi32>
    %35 = arith.addi %17, %34 : vector<1x512xi32>
    %c0_i32_9 = arith.constant 0 : i32
    %36 = vector.broadcast %c0_i32_9 : i32 to vector<1x512xi32>
    %37 = arith.cmpi sge, %35, %36 : vector<1x512xi32>
    %c-17_i32_10 = arith.constant -17 : i32
    %38 = vector.broadcast %c-17_i32_10 : i32 to vector<1x512xi32>
    %39 = arith.addi %17, %38 : vector<1x512xi32>
    %c256_i32_11 = arith.constant 256 : i32
    %40 = vector.broadcast %c256_i32_11 : i32 to vector<1x512xi32>
    %41 = arith.cmpi slt, %39, %40 : vector<1x512xi32>
    %42 = arith.andi %37, %41 : vector<1x512xi1>
    %c-1_i32 = arith.constant -1 : i32
    %43 = vector.broadcast %c-1_i32 : i32 to vector<1x512xi32>
    %44 = arith.addi %33, %43 : vector<1x512xi32>
    %c0_i32_12 = arith.constant 0 : i32
    %45 = vector.broadcast %c0_i32_12 : i32 to vector<1x512xi32>
    %46 = arith.cmpi sge, %44, %45 : vector<1x512xi32>
    %47 = arith.andi %42, %46 : vector<1x512xi1>
    %c-1_i32_13 = arith.constant -1 : i32
    %48 = vector.broadcast %c-1_i32_13 : i32 to vector<1x512xi32>
    %49 = arith.addi %33, %48 : vector<1x512xi32>
    %c16_i32_14 = arith.constant 16 : i32
    %50 = vector.broadcast %c16_i32_14 : i32 to vector<1x512xi32>
    %51 = arith.cmpi slt, %49, %50 : vector<1x512xi32>
    %52 = arith.andi %47, %51 : vector<1x512xi1>
    %c-16_i32 = arith.constant -16 : i32
    %53 = vector.broadcast %c-16_i32 : i32 to vector<1x512xi32>
    %54 = arith.addi %17, %53 : vector<1x512xi32>
    %c0_i32_15 = arith.constant 0 : i32
    %55 = vector.broadcast %c0_i32_15 : i32 to vector<1x512xi32>
    %56 = arith.cmpi sge, %54, %55 : vector<1x512xi32>
    %c-16_i32_16 = arith.constant -16 : i32
    %57 = vector.broadcast %c-16_i32_16 : i32 to vector<1x512xi32>
    %58 = arith.addi %17, %57 : vector<1x512xi32>
    %c256_i32_17 = arith.constant 256 : i32
    %59 = vector.broadcast %c256_i32_17 : i32 to vector<1x512xi32>
    %60 = arith.cmpi slt, %58, %59 : vector<1x512xi32>
    %61 = arith.andi %56, %60 : vector<1x512xi1>
    %c0_i32_18 = arith.constant 0 : i32
    %62 = vector.broadcast %c0_i32_18 : i32 to vector<1x512xi32>
    %63 = arith.addi %33, %62 : vector<1x512xi32>
    %c0_i32_19 = arith.constant 0 : i32
    %64 = vector.broadcast %c0_i32_19 : i32 to vector<1x512xi32>
    %65 = arith.cmpi sge, %63, %64 : vector<1x512xi32>
    %66 = arith.andi %61, %65 : vector<1x512xi1>
    %c0_i32_20 = arith.constant 0 : i32
    %67 = vector.broadcast %c0_i32_20 : i32 to vector<1x512xi32>
    %68 = arith.addi %33, %67 : vector<1x512xi32>
    %c16_i32_21 = arith.constant 16 : i32
    %69 = vector.broadcast %c16_i32_21 : i32 to vector<1x512xi32>
    %70 = arith.cmpi slt, %68, %69 : vector<1x512xi32>
    %71 = arith.andi %66, %70 : vector<1x512xi1>
    %c-15_i32 = arith.constant -15 : i32
    %72 = vector.broadcast %c-15_i32 : i32 to vector<1x512xi32>
    %73 = arith.addi %17, %72 : vector<1x512xi32>
    %c0_i32_22 = arith.constant 0 : i32
    %74 = vector.broadcast %c0_i32_22 : i32 to vector<1x512xi32>
    %75 = arith.cmpi sge, %73, %74 : vector<1x512xi32>
    %c-15_i32_23 = arith.constant -15 : i32
    %76 = vector.broadcast %c-15_i32_23 : i32 to vector<1x512xi32>
    %77 = arith.addi %17, %76 : vector<1x512xi32>
    %c256_i32_24 = arith.constant 256 : i32
    %78 = vector.broadcast %c256_i32_24 : i32 to vector<1x512xi32>
    %79 = arith.cmpi slt, %77, %78 : vector<1x512xi32>
    %80 = arith.andi %75, %79 : vector<1x512xi1>
    %c1_i32_25 = arith.constant 1 : i32
    %81 = vector.broadcast %c1_i32_25 : i32 to vector<1x512xi32>
    %82 = arith.addi %33, %81 : vector<1x512xi32>
    %c0_i32_26 = arith.constant 0 : i32
    %83 = vector.broadcast %c0_i32_26 : i32 to vector<1x512xi32>
    %84 = arith.cmpi sge, %82, %83 : vector<1x512xi32>
    %85 = arith.andi %80, %84 : vector<1x512xi1>
    %c1_i32_27 = arith.constant 1 : i32
    %86 = vector.broadcast %c1_i32_27 : i32 to vector<1x512xi32>
    %87 = arith.addi %33, %86 : vector<1x512xi32>
    %c16_i32_28 = arith.constant 16 : i32
    %88 = vector.broadcast %c16_i32_28 : i32 to vector<1x512xi32>
    %89 = arith.cmpi slt, %87, %88 : vector<1x512xi32>
    %90 = arith.andi %85, %89 : vector<1x512xi1>
    %c-1_i32_29 = arith.constant -1 : i32
    %91 = vector.broadcast %c-1_i32_29 : i32 to vector<1x512xi32>
    %92 = arith.addi %17, %91 : vector<1x512xi32>
    %c0_i32_30 = arith.constant 0 : i32
    %93 = vector.broadcast %c0_i32_30 : i32 to vector<1x512xi32>
    %94 = arith.cmpi sge, %92, %93 : vector<1x512xi32>
    %c-1_i32_31 = arith.constant -1 : i32
    %95 = vector.broadcast %c-1_i32_31 : i32 to vector<1x512xi32>
    %96 = arith.addi %17, %95 : vector<1x512xi32>
    %c256_i32_32 = arith.constant 256 : i32
    %97 = vector.broadcast %c256_i32_32 : i32 to vector<1x512xi32>
    %98 = arith.cmpi slt, %96, %97 : vector<1x512xi32>
    %99 = arith.andi %94, %98 : vector<1x512xi1>
    %c-1_i32_33 = arith.constant -1 : i32
    %100 = vector.broadcast %c-1_i32_33 : i32 to vector<1x512xi32>
    %101 = arith.addi %33, %100 : vector<1x512xi32>
    %c0_i32_34 = arith.constant 0 : i32
    %102 = vector.broadcast %c0_i32_34 : i32 to vector<1x512xi32>
    %103 = arith.cmpi sge, %101, %102 : vector<1x512xi32>
    %104 = arith.andi %99, %103 : vector<1x512xi1>
    %c-1_i32_35 = arith.constant -1 : i32
    %105 = vector.broadcast %c-1_i32_35 : i32 to vector<1x512xi32>
    %106 = arith.addi %33, %105 : vector<1x512xi32>
    %c16_i32_36 = arith.constant 16 : i32
    %107 = vector.broadcast %c16_i32_36 : i32 to vector<1x512xi32>
    %108 = arith.cmpi slt, %106, %107 : vector<1x512xi32>
    %109 = arith.andi %104, %108 : vector<1x512xi1>
    %c0_i32_37 = arith.constant 0 : i32
    %110 = vector.broadcast %c0_i32_37 : i32 to vector<1x512xi32>
    %111 = arith.addi %17, %110 : vector<1x512xi32>
    %c0_i32_38 = arith.constant 0 : i32
    %112 = vector.broadcast %c0_i32_38 : i32 to vector<1x512xi32>
    %113 = arith.cmpi sge, %111, %112 : vector<1x512xi32>
    %c0_i32_39 = arith.constant 0 : i32
    %114 = vector.broadcast %c0_i32_39 : i32 to vector<1x512xi32>
    %115 = arith.addi %17, %114 : vector<1x512xi32>
    %c256_i32_40 = arith.constant 256 : i32
    %116 = vector.broadcast %c256_i32_40 : i32 to vector<1x512xi32>
    %117 = arith.cmpi slt, %115, %116 : vector<1x512xi32>
    %118 = arith.andi %113, %117 : vector<1x512xi1>
    %c0_i32_41 = arith.constant 0 : i32
    %119 = vector.broadcast %c0_i32_41 : i32 to vector<1x512xi32>
    %120 = arith.addi %33, %119 : vector<1x512xi32>
    %c0_i32_42 = arith.constant 0 : i32
    %121 = vector.broadcast %c0_i32_42 : i32 to vector<1x512xi32>
    %122 = arith.cmpi sge, %120, %121 : vector<1x512xi32>
    %123 = arith.andi %118, %122 : vector<1x512xi1>
    %c0_i32_43 = arith.constant 0 : i32
    %124 = vector.broadcast %c0_i32_43 : i32 to vector<1x512xi32>
    %125 = arith.addi %33, %124 : vector<1x512xi32>
    %c16_i32_44 = arith.constant 16 : i32
    %126 = vector.broadcast %c16_i32_44 : i32 to vector<1x512xi32>
    %127 = arith.cmpi slt, %125, %126 : vector<1x512xi32>
    %128 = arith.andi %123, %127 : vector<1x512xi1>
    %c1_i32_45 = arith.constant 1 : i32
    %129 = vector.broadcast %c1_i32_45 : i32 to vector<1x512xi32>
    %130 = arith.addi %17, %129 : vector<1x512xi32>
    %c0_i32_46 = arith.constant 0 : i32
    %131 = vector.broadcast %c0_i32_46 : i32 to vector<1x512xi32>
    %132 = arith.cmpi sge, %130, %131 : vector<1x512xi32>
    %c1_i32_47 = arith.constant 1 : i32
    %133 = vector.broadcast %c1_i32_47 : i32 to vector<1x512xi32>
    %134 = arith.addi %17, %133 : vector<1x512xi32>
    %c256_i32_48 = arith.constant 256 : i32
    %135 = vector.broadcast %c256_i32_48 : i32 to vector<1x512xi32>
    %136 = arith.cmpi slt, %134, %135 : vector<1x512xi32>
    %137 = arith.andi %132, %136 : vector<1x512xi1>
    %c1_i32_49 = arith.constant 1 : i32
    %138 = vector.broadcast %c1_i32_49 : i32 to vector<1x512xi32>
    %139 = arith.addi %33, %138 : vector<1x512xi32>
    %c0_i32_50 = arith.constant 0 : i32
    %140 = vector.broadcast %c0_i32_50 : i32 to vector<1x512xi32>
    %141 = arith.cmpi sge, %139, %140 : vector<1x512xi32>
    %142 = arith.andi %137, %141 : vector<1x512xi1>
    %c1_i32_51 = arith.constant 1 : i32
    %143 = vector.broadcast %c1_i32_51 : i32 to vector<1x512xi32>
    %144 = arith.addi %33, %143 : vector<1x512xi32>
    %c16_i32_52 = arith.constant 16 : i32
    %145 = vector.broadcast %c16_i32_52 : i32 to vector<1x512xi32>
    %146 = arith.cmpi slt, %144, %145 : vector<1x512xi32>
    %147 = arith.andi %142, %146 : vector<1x512xi1>
    %c15_i32 = arith.constant 15 : i32
    %148 = vector.broadcast %c15_i32 : i32 to vector<1x512xi32>
    %149 = arith.addi %17, %148 : vector<1x512xi32>
    %c0_i32_53 = arith.constant 0 : i32
    %150 = vector.broadcast %c0_i32_53 : i32 to vector<1x512xi32>
    %151 = arith.cmpi sge, %149, %150 : vector<1x512xi32>
    %c15_i32_54 = arith.constant 15 : i32
    %152 = vector.broadcast %c15_i32_54 : i32 to vector<1x512xi32>
    %153 = arith.addi %17, %152 : vector<1x512xi32>
    %c256_i32_55 = arith.constant 256 : i32
    %154 = vector.broadcast %c256_i32_55 : i32 to vector<1x512xi32>
    %155 = arith.cmpi slt, %153, %154 : vector<1x512xi32>
    %156 = arith.andi %151, %155 : vector<1x512xi1>
    %c-1_i32_56 = arith.constant -1 : i32
    %157 = vector.broadcast %c-1_i32_56 : i32 to vector<1x512xi32>
    %158 = arith.addi %33, %157 : vector<1x512xi32>
    %c0_i32_57 = arith.constant 0 : i32
    %159 = vector.broadcast %c0_i32_57 : i32 to vector<1x512xi32>
    %160 = arith.cmpi sge, %158, %159 : vector<1x512xi32>
    %161 = arith.andi %156, %160 : vector<1x512xi1>
    %c-1_i32_58 = arith.constant -1 : i32
    %162 = vector.broadcast %c-1_i32_58 : i32 to vector<1x512xi32>
    %163 = arith.addi %33, %162 : vector<1x512xi32>
    %c16_i32_59 = arith.constant 16 : i32
    %164 = vector.broadcast %c16_i32_59 : i32 to vector<1x512xi32>
    %165 = arith.cmpi slt, %163, %164 : vector<1x512xi32>
    %166 = arith.andi %161, %165 : vector<1x512xi1>
    %c16_i32_60 = arith.constant 16 : i32
    %167 = vector.broadcast %c16_i32_60 : i32 to vector<1x512xi32>
    %168 = arith.addi %17, %167 : vector<1x512xi32>
    %c0_i32_61 = arith.constant 0 : i32
    %169 = vector.broadcast %c0_i32_61 : i32 to vector<1x512xi32>
    %170 = arith.cmpi sge, %168, %169 : vector<1x512xi32>
    %c16_i32_62 = arith.constant 16 : i32
    %171 = vector.broadcast %c16_i32_62 : i32 to vector<1x512xi32>
    %172 = arith.addi %17, %171 : vector<1x512xi32>
    %c256_i32_63 = arith.constant 256 : i32
    %173 = vector.broadcast %c256_i32_63 : i32 to vector<1x512xi32>
    %174 = arith.cmpi slt, %172, %173 : vector<1x512xi32>
    %175 = arith.andi %170, %174 : vector<1x512xi1>
    %c0_i32_64 = arith.constant 0 : i32
    %176 = vector.broadcast %c0_i32_64 : i32 to vector<1x512xi32>
    %177 = arith.addi %33, %176 : vector<1x512xi32>
    %c0_i32_65 = arith.constant 0 : i32
    %178 = vector.broadcast %c0_i32_65 : i32 to vector<1x512xi32>
    %179 = arith.cmpi sge, %177, %178 : vector<1x512xi32>
    %180 = arith.andi %175, %179 : vector<1x512xi1>
    %c0_i32_66 = arith.constant 0 : i32
    %181 = vector.broadcast %c0_i32_66 : i32 to vector<1x512xi32>
    %182 = arith.addi %33, %181 : vector<1x512xi32>
    %c16_i32_67 = arith.constant 16 : i32
    %183 = vector.broadcast %c16_i32_67 : i32 to vector<1x512xi32>
    %184 = arith.cmpi slt, %182, %183 : vector<1x512xi32>
    %185 = arith.andi %180, %184 : vector<1x512xi1>
    %c17_i32 = arith.constant 17 : i32
    %186 = vector.broadcast %c17_i32 : i32 to vector<1x512xi32>
    %187 = arith.addi %17, %186 : vector<1x512xi32>
    %c0_i32_68 = arith.constant 0 : i32
    %188 = vector.broadcast %c0_i32_68 : i32 to vector<1x512xi32>
    %189 = arith.cmpi sge, %187, %188 : vector<1x512xi32>
    %c17_i32_69 = arith.constant 17 : i32
    %190 = vector.broadcast %c17_i32_69 : i32 to vector<1x512xi32>
    %191 = arith.addi %17, %190 : vector<1x512xi32>
    %c256_i32_70 = arith.constant 256 : i32
    %192 = vector.broadcast %c256_i32_70 : i32 to vector<1x512xi32>
    %193 = arith.cmpi slt, %191, %192 : vector<1x512xi32>
    %194 = arith.andi %189, %193 : vector<1x512xi1>
    %c1_i32_71 = arith.constant 1 : i32
    %195 = vector.broadcast %c1_i32_71 : i32 to vector<1x512xi32>
    %196 = arith.addi %33, %195 : vector<1x512xi32>
    %c0_i32_72 = arith.constant 0 : i32
    %197 = vector.broadcast %c0_i32_72 : i32 to vector<1x512xi32>
    %198 = arith.cmpi sge, %196, %197 : vector<1x512xi32>
    %199 = arith.andi %194, %198 : vector<1x512xi1>
    %c1_i32_73 = arith.constant 1 : i32
    %200 = vector.broadcast %c1_i32_73 : i32 to vector<1x512xi32>
    %201 = arith.addi %33, %200 : vector<1x512xi32>
    %c16_i32_74 = arith.constant 16 : i32
    %202 = vector.broadcast %c16_i32_74 : i32 to vector<1x512xi32>
    %203 = arith.cmpi slt, %201, %202 : vector<1x512xi32>
    %204 = arith.andi %199, %203 : vector<1x512xi1>
    %c17_i32_75 = arith.constant 17 : i32
    %205 = tpu.dynamic_rotate %0 by %c17_i32_75 dim 1 : vector<8x512xf32>, i32 -> vector<8x512xf32>
    %cst = arith.constant 0.000000e+00 : f32
    %206 = vector.shape_cast %52 : vector<1x512xi1> to vector<1x512xi1>
    %207 = vector.broadcast %206 : vector<1x512xi1> to vector<8x512xi1>
    %208 = vector.broadcast %cst : f32 to vector<8x512xf32>
    %209 = arith.select %207, %205, %208 : vector<8x512xi1>, vector<8x512xf32>
    %c16_i32_76 = arith.constant 16 : i32
    %210 = tpu.dynamic_rotate %0 by %c16_i32_76 dim 1 : vector<8x512xf32>, i32 -> vector<8x512xf32>
    %cst_77 = arith.constant 0.000000e+00 : f32
    %211 = vector.shape_cast %71 : vector<1x512xi1> to vector<1x512xi1>
    %212 = vector.broadcast %211 : vector<1x512xi1> to vector<8x512xi1>
    %213 = vector.broadcast %cst_77 : f32 to vector<8x512xf32>
    %214 = arith.select %212, %210, %213 : vector<8x512xi1>, vector<8x512xf32>
    %c15_i32_78 = arith.constant 15 : i32
    %215 = tpu.dynamic_rotate %0 by %c15_i32_78 dim 1 : vector<8x512xf32>, i32 -> vector<8x512xf32>
    %cst_79 = arith.constant 0.000000e+00 : f32
    %216 = vector.shape_cast %90 : vector<1x512xi1> to vector<1x512xi1>
    %217 = vector.broadcast %216 : vector<1x512xi1> to vector<8x512xi1>
    %218 = vector.broadcast %cst_79 : f32 to vector<8x512xf32>
    %219 = arith.select %217, %215, %218 : vector<8x512xi1>, vector<8x512xf32>
    %c1_i32_80 = arith.constant 1 : i32
    %220 = tpu.dynamic_rotate %0 by %c1_i32_80 dim 1 : vector<8x512xf32>, i32 -> vector<8x512xf32>
    %cst_81 = arith.constant 0.000000e+00 : f32
    %221 = vector.shape_cast %109 : vector<1x512xi1> to vector<1x512xi1>
    %222 = vector.broadcast %221 : vector<1x512xi1> to vector<8x512xi1>
    %223 = vector.broadcast %cst_81 : f32 to vector<8x512xf32>
    %224 = arith.select %222, %220, %223 : vector<8x512xi1>, vector<8x512xf32>
    %cst_82 = arith.constant 0.000000e+00 : f32
    %225 = vector.shape_cast %128 : vector<1x512xi1> to vector<1x512xi1>
    %226 = vector.broadcast %225 : vector<1x512xi1> to vector<8x512xi1>
    %227 = vector.broadcast %cst_82 : f32 to vector<8x512xf32>
    %228 = arith.select %226, %0, %227 : vector<8x512xi1>, vector<8x512xf32>
    %c511_i32 = arith.constant 511 : i32
    %229 = tpu.dynamic_rotate %0 by %c511_i32 dim 1 : vector<8x512xf32>, i32 -> vector<8x512xf32>
    %cst_83 = arith.constant 0.000000e+00 : f32
    %230 = vector.shape_cast %147 : vector<1x512xi1> to vector<1x512xi1>
    %231 = vector.broadcast %230 : vector<1x512xi1> to vector<8x512xi1>
    %232 = vector.broadcast %cst_83 : f32 to vector<8x512xf32>
    %233 = arith.select %231, %229, %232 : vector<8x512xi1>, vector<8x512xf32>
    %c497_i32 = arith.constant 497 : i32
    %234 = tpu.dynamic_rotate %0 by %c497_i32 dim 1 : vector<8x512xf32>, i32 -> vector<8x512xf32>
    %cst_84 = arith.constant 0.000000e+00 : f32
    %235 = vector.shape_cast %166 : vector<1x512xi1> to vector<1x512xi1>
    %236 = vector.broadcast %235 : vector<1x512xi1> to vector<8x512xi1>
    %237 = vector.broadcast %cst_84 : f32 to vector<8x512xf32>
    %238 = arith.select %236, %234, %237 : vector<8x512xi1>, vector<8x512xf32>
    %c496_i32 = arith.constant 496 : i32
    %239 = tpu.dynamic_rotate %0 by %c496_i32 dim 1 : vector<8x512xf32>, i32 -> vector<8x512xf32>
    %cst_85 = arith.constant 0.000000e+00 : f32
    %240 = vector.shape_cast %185 : vector<1x512xi1> to vector<1x512xi1>
    %241 = vector.broadcast %240 : vector<1x512xi1> to vector<8x512xi1>
    %242 = vector.broadcast %cst_85 : f32 to vector<8x512xf32>
    %243 = arith.select %241, %239, %242 : vector<8x512xi1>, vector<8x512xf32>
    %c495_i32 = arith.constant 495 : i32
    %244 = tpu.dynamic_rotate %0 by %c495_i32 dim 1 : vector<8x512xf32>, i32 -> vector<8x512xf32>
    %cst_86 = arith.constant 0.000000e+00 : f32
    %245 = vector.shape_cast %204 : vector<1x512xi1> to vector<1x512xi1>
    %246 = vector.broadcast %245 : vector<1x512xi1> to vector<8x512xi1>
    %247 = vector.broadcast %cst_86 : f32 to vector<8x512xf32>
    %248 = arith.select %246, %244, %247 : vector<8x512xi1>, vector<8x512xf32>
    %249 = tpu.concatenate %209, %214, %219, %224, %228, %233, %238, %243, %248 in 0 : vector<8x512xf32>, vector<8x512xf32>, vector<8x512xf32>, vector<8x512xf32>, vector<8x512xf32>, vector<8x512xf32>, vector<8x512xf32>, vector<8x512xf32>, vector<8x512xf32> -> vector<72x512xf32>
    %250 = arith.truncf %249 : vector<72x512xf32> to vector<72x512xbf16>
    %c0_87 = arith.constant 0 : index
    %c0_88 = arith.constant 0 : index
    %251 = vector.load %arg2[%c0_87, %c0_88] : memref<12x72xbf16, #tpu.memory_space<vmem>>, vector<12x72xbf16>
    %cst_89 = arith.constant dense<0.000000e+00> : vector<12x512xf32>
    %252 = tpu.matmul %251, %250, %cst_89 {dimension_numbers = #tpu.dot_dimension_numbers<[1], [0], [0], [1], [0, 0, 1, 1], [], []>} : vector<12x72xbf16>, vector<72x512xbf16>, vector<12x512xf32> -> vector<12x512xf32>
    %c0_90 = arith.constant 0 : index
    %c0_91 = arith.constant 0 : index
    %253 = vector.load %arg3[%c0_90, %c0_91] : memref<12x1xf32, #tpu.memory_space<vmem>>, vector<12x1xf32>
    %254 = vector.broadcast %253 : vector<12x1xf32> to vector<12x512xf32>
    %255 = arith.addf %252, %254 : vector<12x512xf32>
    %256 = vector.extract_strided_slice %255 {offsets = [0, 0], sizes = [8, 512], strides = [1, 1]} : vector<12x512xf32> to vector<8x512xf32>
    %cst_92 = arith.constant 0.000000e+00 : f32
    %257 = vector.broadcast %cst_92 : f32 to vector<8x512xf32>
    %258 = arith.subf %257, %256 : vector<8x512xf32>
    %259 = math.exp %258 : vector<8x512xf32>
    %cst_93 = arith.constant 1.000000e+00 : f32
    %260 = vector.broadcast %cst_93 : f32 to vector<8x512xf32>
    %261 = arith.addf %260, %259 : vector<8x512xf32>
    %262 = tpu.reciprocal %261 {approx = true} : vector<8x512xf32> -> vector<8x512xf32>
    %263 = arith.mulf %256, %262 : vector<8x512xf32>
    %c17_i32_94 = arith.constant 17 : i32
    %264 = tpu.dynamic_rotate %263 by %c17_i32_94 dim 1 : vector<8x512xf32>, i32 -> vector<8x512xf32>
    %cst_95 = arith.constant 0.000000e+00 : f32
    %265 = vector.shape_cast %52 : vector<1x512xi1> to vector<1x512xi1>
    %266 = vector.broadcast %265 : vector<1x512xi1> to vector<8x512xi1>
    %267 = vector.broadcast %cst_95 : f32 to vector<8x512xf32>
    %268 = arith.select %266, %264, %267 : vector<8x512xi1>, vector<8x512xf32>
    %c16_i32_96 = arith.constant 16 : i32
    %269 = tpu.dynamic_rotate %263 by %c16_i32_96 dim 1 : vector<8x512xf32>, i32 -> vector<8x512xf32>
    %cst_97 = arith.constant 0.000000e+00 : f32
    %270 = vector.shape_cast %71 : vector<1x512xi1> to vector<1x512xi1>
    %271 = vector.broadcast %270 : vector<1x512xi1> to vector<8x512xi1>
    %272 = vector.broadcast %cst_97 : f32 to vector<8x512xf32>
    %273 = arith.select %271, %269, %272 : vector<8x512xi1>, vector<8x512xf32>
    %c15_i32_98 = arith.constant 15 : i32
    %274 = tpu.dynamic_rotate %263 by %c15_i32_98 dim 1 : vector<8x512xf32>, i32 -> vector<8x512xf32>
    %cst_99 = arith.constant 0.000000e+00 : f32
    %275 = vector.shape_cast %90 : vector<1x512xi1> to vector<1x512xi1>
    %276 = vector.broadcast %275 : vector<1x512xi1> to vector<8x512xi1>
    %277 = vector.broadcast %cst_99 : f32 to vector<8x512xf32>
    %278 = arith.select %276, %274, %277 : vector<8x512xi1>, vector<8x512xf32>
    %c1_i32_100 = arith.constant 1 : i32
    %279 = tpu.dynamic_rotate %263 by %c1_i32_100 dim 1 : vector<8x512xf32>, i32 -> vector<8x512xf32>
    %cst_101 = arith.constant 0.000000e+00 : f32
    %280 = vector.shape_cast %109 : vector<1x512xi1> to vector<1x512xi1>
    %281 = vector.broadcast %280 : vector<1x512xi1> to vector<8x512xi1>
    %282 = vector.broadcast %cst_101 : f32 to vector<8x512xf32>
    %283 = arith.select %281, %279, %282 : vector<8x512xi1>, vector<8x512xf32>
    %cst_102 = arith.constant 0.000000e+00 : f32
    %284 = vector.shape_cast %128 : vector<1x512xi1> to vector<1x512xi1>
    %285 = vector.broadcast %284 : vector<1x512xi1> to vector<8x512xi1>
    %286 = vector.broadcast %cst_102 : f32 to vector<8x512xf32>
    %287 = arith.select %285, %263, %286 : vector<8x512xi1>, vector<8x512xf32>
    %c511_i32_103 = arith.constant 511 : i32
    %288 = tpu.dynamic_rotate %263 by %c511_i32_103 dim 1 : vector<8x512xf32>, i32 -> vector<8x512xf32>
    %cst_104 = arith.constant 0.000000e+00 : f32
    %289 = vector.shape_cast %147 : vector<1x512xi1> to vector<1x512xi1>
    %290 = vector.broadcast %289 : vector<1x512xi1> to vector<8x512xi1>
    %291 = vector.broadcast %cst_104 : f32 to vector<8x512xf32>
    %292 = arith.select %290, %288, %291 : vector<8x512xi1>, vector<8x512xf32>
    %c497_i32_105 = arith.constant 497 : i32
    %293 = tpu.dynamic_rotate %263 by %c497_i32_105 dim 1 : vector<8x512xf32>, i32 -> vector<8x512xf32>
    %cst_106 = arith.constant 0.000000e+00 : f32
    %294 = vector.shape_cast %166 : vector<1x512xi1> to vector<1x512xi1>
    %295 = vector.broadcast %294 : vector<1x512xi1> to vector<8x512xi1>
    %296 = vector.broadcast %cst_106 : f32 to vector<8x512xf32>
    %297 = arith.select %295, %293, %296 : vector<8x512xi1>, vector<8x512xf32>
    %c496_i32_107 = arith.constant 496 : i32
    %298 = tpu.dynamic_rotate %263 by %c496_i32_107 dim 1 : vector<8x512xf32>, i32 -> vector<8x512xf32>
    %cst_108 = arith.constant 0.000000e+00 : f32
    %299 = vector.shape_cast %185 : vector<1x512xi1> to vector<1x512xi1>
    %300 = vector.broadcast %299 : vector<1x512xi1> to vector<8x512xi1>
    %301 = vector.broadcast %cst_108 : f32 to vector<8x512xf32>
    %302 = arith.select %300, %298, %301 : vector<8x512xi1>, vector<8x512xf32>
    %c495_i32_109 = arith.constant 495 : i32
    %303 = tpu.dynamic_rotate %263 by %c495_i32_109 dim 1 : vector<8x512xf32>, i32 -> vector<8x512xf32>
    %cst_110 = arith.constant 0.000000e+00 : f32
    %304 = vector.shape_cast %204 : vector<1x512xi1> to vector<1x512xi1>
    %305 = vector.broadcast %304 : vector<1x512xi1> to vector<8x512xi1>
    %306 = vector.broadcast %cst_110 : f32 to vector<8x512xf32>
    %307 = arith.select %305, %303, %306 : vector<8x512xi1>, vector<8x512xf32>
    %308 = tpu.concatenate %268, %273, %278, %283, %287, %292, %297, %302, %307 in 0 : vector<8x512xf32>, vector<8x512xf32>, vector<8x512xf32>, vector<8x512xf32>, vector<8x512xf32>, vector<8x512xf32>, vector<8x512xf32>, vector<8x512xf32>, vector<8x512xf32> -> vector<72x512xf32>
    %309 = arith.truncf %308 : vector<72x512xf32> to vector<72x512xbf16>
    %310 = vector.extract_strided_slice %255 {offsets = [8, 0], sizes = [4, 512], strides = [1, 1]} : vector<12x512xf32> to vector<4x512xf32>
    %c0_111 = arith.constant 0 : index
    %c0_112 = arith.constant 0 : index
    %311 = vector.load %arg4[%c0_111, %c0_112] : memref<4x72xbf16, #tpu.memory_space<vmem>>, vector<4x72xbf16>
    %cst_113 = arith.constant dense<0.000000e+00> : vector<4x512xf32>
    %312 = tpu.matmul %311, %309, %cst_113 {dimension_numbers = #tpu.dot_dimension_numbers<[1], [0], [0], [1], [0, 0, 1, 1], [], []>} : vector<4x72xbf16>, vector<72x512xbf16>, vector<4x512xf32> -> vector<4x512xf32>
    %313 = arith.addf %310, %312 : vector<4x512xf32>
    %cst_114 = arith.constant 0.000000e+00 : f32
    %314 = vector.broadcast %cst_114 : f32 to vector<4x512xf32>
    %315 = arith.subf %314, %313 : vector<4x512xf32>
    %316 = math.exp %315 : vector<4x512xf32>
    %cst_115 = arith.constant 1.000000e+00 : f32
    %317 = vector.broadcast %cst_115 : f32 to vector<4x512xf32>
    %318 = arith.addf %317, %316 : vector<4x512xf32>
    %319 = tpu.reciprocal %318 {approx = true} : vector<4x512xf32> -> vector<4x512xf32>
    %320 = arith.mulf %313, %319 : vector<4x512xf32>
    %c0_116 = arith.constant 0 : index
    %c0_117 = arith.constant 0 : index
    %321 = vector.load %arg5[%c0_116, %c0_117] : memref<4x512xf32, #tpu.memory_space<vmem>>, vector<4x512xf32>
    tpu.vector_store %arg5[%c0_116, %c0_117], %320 {strides = array<i32>} : memref<4x512xf32, #tpu.memory_space<vmem>>, vector<4x512xf32>,
    return
  }
  func.func @transform_0(%arg0: i32) -> (i32, i32) {
    %c0_i32 = arith.constant 0 : i32
    %c0_i32_0 = arith.constant 0 : i32
    %c0_i32_1 = arith.constant 0 : i32
    return %c0_i32, %c0_i32_0 : i32, i32
  }
  func.func @transform_1(%arg0: i32) -> (i32, i32) {
    %c0_i32 = arith.constant 0 : i32
    %c0_i32_0 = arith.constant 0 : i32
    %c0_i32_1 = arith.constant 0 : i32
    return %c0_i32, %c0_i32_0 : i32, i32
  }
  func.func @transform_2(%arg0: i32) -> (i32, i32) {
    %c0_i32 = arith.constant 0 : i32
    %c0_i32_0 = arith.constant 0 : i32
    %c0_i32_1 = arith.constant 0 : i32
    return %c0_i32, %c0_i32_0 : i32, i32
  }
  func.func @transform_3(%arg0: i32) -> (i32, i32) {
    %c0_i32 = arith.constant 0 : i32
    %c0_i32_0 = arith.constant 0 : i32
    %c0_i32_1 = arith.constant 0 : i32
    return %c0_i32, %c0_i32_0 : i32, i32
  }
  func.func @transform_4(%arg0: i32) -> (i32, i32) {
    %c0_i32 = arith.constant 0 : i32
    %c0_i32_0 = arith.constant 0 : i32
    %c0_i32_1 = arith.constant 0 : i32
    return %c0_i32, %c0_i32_0 : i32, i32
  }
}

</mosaic_0001>

<llo_original>
// kernel: dense_conv_forward.1
$region0: #{dense_conv_forward.1}
  #allocation0 [shape = 'u32[]', space=smem, size = 0x4, offset = 0x4, fixed_abs, tag = 'smem constant byte address 0x4 - core index']
  #allocation1 [shape = 'u32[72,128]{1,0:T(1,128)}', space=vmem, size = 0x9000, scoped, tag = 'internal scratch']
  %s0 = inlined_call_operand.vmem [shape: f32[8,512], index: 0, kind: input, shape index: {}]
  %s1 = inlined_call_operand.vmem [shape: bf16[12,72], index: 1, kind: input, shape index: {}]
  %s2 = inlined_call_operand.vmem [shape: f32[12,1], index: 2, kind: input, shape index: {}]
  %s3 = inlined_call_operand.vmem [shape: bf16[4,72], index: 3, kind: input, shape index: {}]
  %s4 = inlined_call_operand.vmem [shape: f32[4,512], index: 4, kind: output, shape index: {}]
  %s5 = sld [smem:[#allocation0]]
  $region26: #{dense_conv_forward.1} parent=0
    _
  %s7 = ssub.s32 1, %s5
  %s8 = scalar_select 0, %s7, %s5
  // Predicated region
  $region2: #{dense_conv_forward.1} parent=0 // pred_check
    _
  $region3: #{dense_conv_forward.1} parent=0 // pred_check_branch
    %10 = sbr.rel (0) target = $region5
  $region4: #{dense_conv_forward.1} parent=0 // pred_region
    _
  $region5: #{dense_conv_forward.1} parent=0 // pred_fallthru
    _
  // Predicated region
  $region6: #{dense_conv_forward.1} parent=0 // pred_check
    _
  $region7: #{dense_conv_forward.1} parent=0 // pred_check_branch
    %12 = sbr.rel (0) target = $region9
  $region8: #{dense_conv_forward.1} parent=0 // pred_region
    _
  $region9: #{dense_conv_forward.1} parent=0 // pred_fallthru
    _
  // Predicated region
  $region10: #{dense_conv_forward.1} parent=0 // pred_check
    _
  $region11: #{dense_conv_forward.1} parent=0 // pred_check_branch
    %14 = sbr.rel (0) target = $region13
  $region12: #{dense_conv_forward.1} parent=0 // pred_region
    _
  $region13: #{dense_conv_forward.1} parent=0 // pred_fallthru
    _
  // Predicated region
  $region14: #{dense_conv_forward.1} parent=0 // pred_check
    _
  $region15: #{dense_conv_forward.1} parent=0 // pred_check_branch
    %16 = sbr.rel (0) target = $region17
  $region16: #{dense_conv_forward.1} parent=0 // pred_region
    _
  $region17: #{dense_conv_forward.1} parent=0 // pred_fallthru
    _
  %v18 = vld [vmem:[%s0] sm:$0xff]
  %v19 = vld [vmem:[%s0 + $0x8] sm:$0xff]
  %v20 = vld [vmem:[%s0 + $0x10] sm:$0xff]
  %v21 = vld [vmem:[%s0 + $0x18] sm:$0xff]
  %v22 = vlaneseq
  %v23 = vand.u32 %v22, 127
  %v24 = vadd.s32 %v23, 128
  %v25 = vadd.s32 %v23, 256
  %v26 = vadd.s32 %v23, 384
  %vm27 = vcmp.lt.s32.totalorder %v23, 0
  %v28 = vsub.s32 0, %v23
  %v29 = vsel %vm27, %v28, %v23
  %v30 = vshrl.u32 %v29, 8
  %v31 = vand.u32 %v29, 255
  %v32 = vsub.s32 0, %v31
  %v33 = vsel %vm27, %v32, %v31
  %vm34 = vcmp.lt.s32.totalorder %v24, 0
  %v35 = vsub.s32 0, %v24
  %v36 = vsel %vm34, %v35, %v24
  %v37 = vshrl.u32 %v36, 8
  %v38 = vand.u32 %v36, 255
  %v39 = vsub.s32 0, %v38
  %v40 = vsel %vm34, %v39, %v38
  %vm41 = vcmp.lt.s32.totalorder %v25, 0
  %v42 = vsub.s32 0, %v25
  %v43 = vsel %vm41, %v42, %v25
  %v44 = vshrl.u32 %v43, 8
  %v45 = vand.u32 %v43, 255
  %v46 = vsub.s32 0, %v45
  %v47 = vsel %vm41, %v46, %v45
  %vm48 = vcmp.lt.s32.totalorder %v26, 0
  %v49 = vsub.s32 0, %v26
  %v50 = vsel %vm48, %v49, %v26
  %v51 = vshrl.u32 %v50, 8
  %v52 = vand.u32 %v50, 255
  %v53 = vsub.s32 0, %v52
  %v54 = vsel %vm48, %v53, %v52
  %vm55 = vcmp.ne.s32.totalorder %v33, 0
  %vm56 = vcmp.ne.s32.totalorder %v40, 0
  %vm57 = vcmp.ne.s32.totalorder %v47, 0
  %vm58 = vcmp.ne.s32.totalorder %v54, 0
  %vm59 = vcmp.lt.s32.totalorder %v33, 0
  %vm60 = vcmp.lt.s32.totalorder %v40, 0
  %vm61 = vcmp.lt.s32.totalorder %v47, 0
  %vm62 = vcmp.lt.s32.totalorder %v54, 0
  %vm63 = vmand %vm59, %vm55
  %vm64 = vmand %vm60, %vm56
  %vm65 = vmand %vm61, %vm57
  %vm66 = vmand %vm62, %vm58
  %v67 = vadd.s32 %v33, 256
  %v68 = vadd.s32 %v40, 256
  %v69 = vadd.s32 %v47, 256
  %v70 = vadd.s32 %v54, 256
  %v71 = vsel %vm63, %v67, %v33
  %v72 = vsel %vm64, %v68, %v40
  %v73 = vsel %vm65, %v69, %v47
  %v74 = vsel %vm66, %v70, %v54
  %vm75 = vcmp.lt.s32.totalorder %v71, 0
  %v76 = vsub.s32 0, %v71
  %v77 = vsel %vm75, %v76, %v71
  %v78 = vshrl.u32 %v77, 4
  %v79 = vand.u32 %v77, 15
  %v80 = vsub.s32 0, %v79
  %v81 = vsel %vm75, %v80, %v79
  %vm82 = vcmp.lt.s32.totalorder %v72, 0
  %v83 = vsub.s32 0, %v72
  %v84 = vsel %vm82, %v83, %v72
  %v85 = vshrl.u32 %v84, 4
  %v86 = vand.u32 %v84, 15
  %v87 = vsub.s32 0, %v86
  %v88 = vsel %vm82, %v87, %v86
  %vm89 = vcmp.lt.s32.totalorder %v73, 0
  %v90 = vsub.s32 0, %v73
  %v91 = vsel %vm89, %v90, %v73
  %v92 = vshrl.u32 %v91, 4
  %v93 = vand.u32 %v91, 15
  %v94 = vsub.s32 0, %v93
  %v95 = vsel %vm89, %v94, %v93
  %vm96 = vcmp.lt.s32.totalorder %v74, 0
  %v97 = vsub.s32 0, %v74
  %v98 = vsel %vm96, %v97, %v74
  %v99 = vshrl.u32 %v98, 4
  %v100 = vand.u32 %v98, 15
  %v101 = vsub.s32 0, %v100
  %v102 = vsel %vm96, %v101, %v100
  %vm103 = vcmp.ne.s32.totalorder %v81, 0
  %vm104 = vcmp.ne.s32.totalorder %v88, 0
  %vm105 = vcmp.ne.s32.totalorder %v95, 0
  %vm106 = vcmp.ne.s32.totalorder %v102, 0
  %vm107 = vcmp.lt.s32.totalorder %v81, 0
  %vm108 = vcmp.lt.s32.totalorder %v88, 0
  %vm109 = vcmp.lt.s32.totalorder %v95, 0
  %vm110 = vcmp.lt.s32.totalorder %v102, 0
  %vm111 = vmand %vm107, %vm103
  %vm112 = vmand %vm108, %vm104
  %vm113 = vmand %vm109, %vm105
  %vm114 = vmand %vm110, %vm106
  %v115 = vadd.s32 %v81, 16
  %v116 = vadd.s32 %v88, 16
  %v117 = vadd.s32 %v95, 16
  %v118 = vadd.s32 %v102, 16
  %v119 = vsel %vm111, %v115, %v81
  %v120 = vsel %vm112, %v116, %v88
  %v121 = vsel %vm113, %v117, %v95
  %v122 = vsel %vm114, %v118, %v102
  %v123 = vadd.s32 %v71, 4294967279
  %v124 = vadd.s32 %v72, 4294967279
  %v125 = vadd.s32 %v73, 4294967279
  %v126 = vadd.s32 %v74, 4294967279
  %vm127 = vcmp.ge.s32.totalorder %v123, 0
  %vm128 = vcmp.ge.s32.totalorder %v124, 0
  %vm129 = vcmp.ge.s32.totalorder %v125, 0
  %vm130 = vcmp.ge.s32.totalorder %v126, 0
  %vm131 = vcmp.lt.s32.totalorder %v123, 256
  %vm132 = vcmp.lt.s32.totalorder %v124, 256
  %vm133 = vcmp.lt.s32.totalorder %v125, 256
  %vm134 = vcmp.lt.s32.totalorder %v126, 256
  %vm135 = vmand %vm127, %vm131
  %vm136 = vmand %vm128, %vm132
  %vm137 = vmand %vm129, %vm133
  %vm138 = vmand %vm130, %vm134
  %v139 = vadd.s32 %v119, 4294967295
  %v140 = vadd.s32 %v120, 4294967295
  %v141 = vadd.s32 %v121, 4294967295
  %v142 = vadd.s32 %v122, 4294967295
  %vm143 = vcmp.ge.s32.totalorder %v139, 0
  %vm144 = vcmp.ge.s32.totalorder %v140, 0
  %vm145 = vcmp.ge.s32.totalorder %v141, 0
  %vm146 = vcmp.ge.s32.totalorder %v142, 0
  %vm147 = vmand %vm135, %vm143
  %vm148 = vmand %vm136, %vm144
  %vm149 = vmand %vm137, %vm145
  %vm150 = vmand %vm138, %vm146
  %vm151 = vcmp.lt.s32.totalorder %v139, 16
  %vm152 = vcmp.lt.s32.totalorder %v140, 16
  %vm153 = vcmp.lt.s32.totalorder %v141, 16
  %vm154 = vcmp.lt.s32.totalorder %v142, 16
  %vm155 = vmand %vm147, %vm151
  %vm156 = vmand %vm148, %vm152
  %vm157 = vmand %vm149, %vm153
  %vm158 = vmand %vm150, %vm154
  %v159 = vadd.s32 %v71, 4294967280
  %v160 = vadd.s32 %v72, 4294967280
  %v161 = vadd.s32 %v73, 4294967280
  %v162 = vadd.s32 %v74, 4294967280
  %vm163 = vcmp.ge.s32.totalorder %v159, 0
  %vm164 = vcmp.ge.s32.totalorder %v160, 0
  %vm165 = vcmp.ge.s32.totalorder %v161, 0
  %vm166 = vcmp.ge.s32.totalorder %v162, 0
  %vm167 = vcmp.lt.s32.totalorder %v159, 256
  %vm168 = vcmp.lt.s32.totalorder %v160, 256
  %vm169 = vcmp.lt.s32.totalorder %v161, 256
  %vm170 = vcmp.lt.s32.totalorder %v162, 256
  %vm171 = vmand %vm163, %vm167
  %vm172 = vmand %vm164, %vm168
  %vm173 = vmand %vm165, %vm169
  %vm174 = vmand %vm166, %vm170
  %vm175 = vcmp.ge.s32.totalorder %v119, 0
  %vm176 = vcmp.ge.s32.totalorder %v120, 0
  %vm177 = vcmp.ge.s32.totalorder %v121, 0
  %vm178 = vcmp.ge.s32.totalorder %v122, 0
  %vm179 = vmand %vm171, %vm175
  %vm180 = vmand %vm172, %vm176
  %vm181 = vmand %vm173, %vm177
  %vm182 = vmand %vm174, %vm178
  %vm183 = vcmp.lt.s32.totalorder %v119, 16
  %vm184 = vcmp.lt.s32.totalorder %v120, 16
  %vm185 = vcmp.lt.s32.totalorder %v121, 16
  %vm186 = vcmp.lt.s32.totalorder %v122, 16
  %vm187 = vmand %vm179, %vm183
  %vm188 = vmand %vm180, %vm184
  %vm189 = vmand %vm181, %vm185
  %vm190 = vmand %vm182, %vm186
  %v191 = vadd.s32 %v71, 4294967281
  %v192 = vadd.s32 %v72, 4294967281
  %v193 = vadd.s32 %v73, 4294967281
  %v194 = vadd.s32 %v74, 4294967281
  %vm195 = vcmp.ge.s32.totalorder %v191, 0
  %vm196 = vcmp.ge.s32.totalorder %v192, 0
  %vm197 = vcmp.ge.s32.totalorder %v193, 0
  %vm198 = vcmp.ge.s32.totalorder %v194, 0
  %vm199 = vcmp.lt.s32.totalorder %v191, 256
  %vm200 = vcmp.lt.s32.totalorder %v192, 256
  %vm201 = vcmp.lt.s32.totalorder %v193, 256
  %vm202 = vcmp.lt.s32.totalorder %v194, 256
  %vm203 = vmand %vm195, %vm199
  %vm204 = vmand %vm196, %vm200
  %vm205 = vmand %vm197, %vm201
  %vm206 = vmand %vm198, %vm202
  %v207 = vadd.s32 %v119, 1
  %v208 = vadd.s32 %v120, 1
  %v209 = vadd.s32 %v121, 1
  %v210 = vadd.s32 %v122, 1
  %vm211 = vcmp.ge.s32.totalorder %v207, 0
  %vm212 = vcmp.ge.s32.totalorder %v208, 0
  %vm213 = vcmp.ge.s32.totalorder %v209, 0
  %vm214 = vcmp.ge.s32.totalorder %v210, 0
  %vm215 = vmand %vm203, %vm211
  %vm216 = vmand %vm204, %vm212
  %vm217 = vmand %vm205, %vm213
  %vm218 = vmand %vm206, %vm214
  %vm219 = vcmp.lt.s32.totalorder %v207, 16
  %vm220 = vcmp.lt.s32.totalorder %v208, 16
  %vm221 = vcmp.lt.s32.totalorder %v209, 16
  %vm222 = vcmp.lt.s32.totalorder %v210, 16
  %vm223 = vmand %vm215, %vm219
  %vm224 = vmand %vm216, %vm220
  %vm225 = vmand %vm217, %vm221
  %vm226 = vmand %vm218, %vm222
  %v227 = vadd.s32 %v71, 4294967295
  %v228 = vadd.s32 %v72, 4294967295
  %v229 = vadd.s32 %v73, 4294967295
  %v230 = vadd.s32 %v74, 4294967295
  %vm231 = vcmp.ge.s32.totalorder %v227, 0
  %vm232 = vcmp.ge.s32.totalorder %v228, 0
  %vm233 = vcmp.ge.s32.totalorder %v229, 0
  %vm234 = vcmp.ge.s32.totalorder %v230, 0
  %vm235 = vcmp.lt.s32.totalorder %v227, 256
  %vm236 = vcmp.lt.s32.totalorder %v228, 256
  %vm237 = vcmp.lt.s32.totalorder %v229, 256
  %vm238 = vcmp.lt.s32.totalorder %v230, 256
  %vm239 = vmand %vm231, %vm235
  %vm240 = vmand %vm232, %vm236
  %vm241 = vmand %vm233, %vm237
  %vm242 = vmand %vm234, %vm238
  %vm243 = vmand %vm239, %vm143
  %vm244 = vmand %vm240, %vm144
  %vm245 = vmand %vm241, %vm145
  %vm246 = vmand %vm242, %vm146
  %vm247 = vmand %vm243, %vm151
  %vm248 = vmand %vm244, %vm152
  %vm249 = vmand %vm245, %vm153
  %vm250 = vmand %vm246, %vm154
  %vm251 = vcmp.ge.s32.totalorder %v71, 0
  %vm252 = vcmp.ge.s32.totalorder %v72, 0
  %vm253 = vcmp.ge.s32.totalorder %v73, 0
  %vm254 = vcmp.ge.s32.totalorder %v74, 0
  %vm255 = vcmp.lt.s32.totalorder %v71, 256
  %vm256 = vcmp.lt.s32.totalorder %v72, 256
  %vm257 = vcmp.lt.s32.totalorder %v73, 256
  %vm258 = vcmp.lt.s32.totalorder %v74, 256
  %vm259 = vmand %vm251, %vm255
  %vm260 = vmand %vm252, %vm256
  %vm261 = vmand %vm253, %vm257
  %vm262 = vmand %vm254, %vm258
  %vm263 = vmand %vm259, %vm175
  %vm264 = vmand %vm260, %vm176
  %vm265 = vmand %vm261, %vm177
  %vm266 = vmand %vm262, %vm178
  %vm267 = vmand %vm263, %vm183
  %vm268 = vmand %vm264, %vm184
  %vm269 = vmand %vm265, %vm185
  %vm270 = vmand %vm266, %vm186
  %v271 = vadd.s32 %v71, 1
  %v272 = vadd.s32 %v72, 1
  %v273 = vadd.s32 %v73, 1
  %v274 = vadd.s32 %v74, 1
  %vm275 = vcmp.ge.s32.totalorder %v271, 0
  %vm276 = vcmp.ge.s32.totalorder %v272, 0
  %vm277 = vcmp.ge.s32.totalorder %v273, 0
  %vm278 = vcmp.ge.s32.totalorder %v274, 0
  %vm279 = vcmp.lt.s32.totalorder %v271, 256
  %vm280 = vcmp.lt.s32.totalorder %v272, 256
  %vm281 = vcmp.lt.s32.totalorder %v273, 256
  %vm282 = vcmp.lt.s32.totalorder %v274, 256
  %vm283 = vmand %vm275, %vm279
  %vm284 = vmand %vm276, %vm280
  %vm285 = vmand %vm277, %vm281
  %vm286 = vmand %vm278, %vm282
  %vm287 = vmand %vm283, %vm211
  %vm288 = vmand %vm284, %vm212
  %vm289 = vmand %vm285, %vm213
  %vm290 = vmand %vm286, %vm214
  %vm291 = vmand %vm287, %vm219
  %vm292 = vmand %vm288, %vm220
  %vm293 = vmand %vm289, %vm221
  %vm294 = vmand %vm290, %vm222
  %v295 = vadd.s32 %v71, 15
  %v296 = vadd.s32 %v72, 15
  %v297 = vadd.s32 %v73, 15
  %v298 = vadd.s32 %v74, 15
  %vm299 = vcmp.ge.s32.totalorder %v295, 0
  %vm300 = vcmp.ge.s32.totalorder %v296, 0
  %vm301 = vcmp.ge.s32.totalorder %v297, 0
  %vm302 = vcmp.ge.s32.totalorder %v298, 0
  %vm303 = vcmp.lt.s32.totalorder %v295, 256
  %vm304 = vcmp.lt.s32.totalorder %v296, 256
  %vm305 = vcmp.lt.s32.totalorder %v297, 256
  %vm306 = vcmp.lt.s32.totalorder %v298, 256
  %vm307 = vmand %vm299, %vm303
  %vm308 = vmand %vm300, %vm304
  %vm309 = vmand %vm301, %vm305
  %vm310 = vmand %vm302, %vm306
  %vm311 = vmand %vm307, %vm143
  %vm312 = vmand %vm308, %vm144
  %vm313 = vmand %vm309, %vm145
  %vm314 = vmand %vm310, %vm146
  %vm315 = vmand %vm311, %vm151
  %vm316 = vmand %vm312, %vm152
  %vm317 = vmand %vm313, %vm153
  %vm318 = vmand %vm314, %vm154
  %v319 = vadd.s32 %v71, 16
  %v320 = vadd.s32 %v72, 16
  %v321 = vadd.s32 %v73, 16
  %v322 = vadd.s32 %v74, 16
  %vm323 = vcmp.ge.s32.totalorder %v319, 0
  %vm324 = vcmp.ge.s32.totalorder %v320, 0
  %vm325 = vcmp.ge.s32.totalorder %v321, 0
  %vm326 = vcmp.ge.s32.totalorder %v322, 0
  %vm327 = vcmp.lt.s32.totalorder %v319, 256
  %vm328 = vcmp.lt.s32.totalorder %v320, 256
  %vm329 = vcmp.lt.s32.totalorder %v321, 256
  %vm330 = vcmp.lt.s32.totalorder %v322, 256
  %vm331 = vmand %vm323, %vm327
  %vm332 = vmand %vm324, %vm328
  %vm333 = vmand %vm325, %vm329
  %vm334 = vmand %vm326, %vm330
  %vm335 = vmand %vm331, %vm175
  %vm336 = vmand %vm332, %vm176
  %vm337 = vmand %vm333, %vm177
  %vm338 = vmand %vm334, %vm178
  %vm339 = vmand %vm335, %vm183
  %vm340 = vmand %vm336, %vm184
  %vm341 = vmand %vm337, %vm185
  %vm342 = vmand %vm338, %vm186
  %v343 = vadd.s32 %v71, 17
  %v344 = vadd.s32 %v72, 17
  %v345 = vadd.s32 %v73, 17
  %v346 = vadd.s32 %v74, 17
  %vm347 = vcmp.ge.s32.totalorder %v343, 0
  %vm348 = vcmp.ge.s32.totalorder %v344, 0
  %vm349 = vcmp.ge.s32.totalorder %v345, 0
  %vm350 = vcmp.ge.s32.totalorder %v346, 0
  %vm351 = vcmp.lt.s32.totalorder %v343, 256
  %vm352 = vcmp.lt.s32.totalorder %v344, 256
  %vm353 = vcmp.lt.s32.totalorder %v345, 256
  %vm354 = vcmp.lt.s32.totalorder %v346, 256
  %vm355 = vmand %vm347, %vm351
  %vm356 = vmand %vm348, %vm352
  %vm357 = vmand %vm349, %vm353
  %vm358 = vmand %vm350, %vm354
  %vm359 = vmand %vm355, %vm211
  %vm360 = vmand %vm356, %vm212
  %vm361 = vmand %vm357, %vm213
  %vm362 = vmand %vm358, %vm214
  %vm363 = vmand %vm359, %vm219
  %vm364 = vmand %vm360, %vm220
  %vm365 = vmand %vm361, %vm221
  %vm366 = vmand %vm362, %vm222
  %367 = vrot.lane.b32.xlu0 %v18, 17
  %v368 = vpop.permute.xlu0 %367
  %369 = vrot.lane.b32.xlu0 %v19, 17
  %v370 = vpop.permute.xlu0 %369
  %371 = vrot.lane.b32.xlu0 %v20, 17
  %v372 = vpop.permute.xlu0 %371
  %373 = vrot.lane.b32.xlu0 %v21, 17
  %v374 = vpop.permute.xlu0 %373
  %vm375 = vcmp.lt.s32.totalorder %v23, 17
  %v376 = vsel %vm375, %v372, %v374
  %v377 = vsel %vm375, %v370, %v372
  %v378 = vsel %vm375, %v368, %v370
  %v379 = vsel %vm375, %v374, %v368
  %v380 = vsel %vm155, 1, 0
  %v381 = vsel %vm156, 1, 0
  %v382 = vsel %vm157, 1, 0
  %v383 = vsel %vm158, 1, 0
  %vm384 = vcmp.eq.s32.totalorder %v380, 1
  %vm385 = vcmp.eq.s32.totalorder %v381, 1
  %vm386 = vcmp.eq.s32.totalorder %v382, 1
  %vm387 = vcmp.eq.s32.totalorder %v383, 1
  %v388 = vsel %vm384, %v379, 0.0
  %v389 = vsel %vm385, %v378, 0.0
  %v390 = vsel %vm386, %v377, 0.0
  %v391 = vsel %vm387, %v376, 0.0
  %392 = vrot.lane.b32.xlu0 %v18, 16
  %v393 = vpop.permute.xlu0 %392
  %394 = vrot.lane.b32.xlu0 %v19, 16
  %v395 = vpop.permute.xlu0 %394
  %396 = vrot.lane.b32.xlu0 %v20, 16
  %v397 = vpop.permute.xlu0 %396
  %398 = vrot.lane.b32.xlu0 %v21, 16
  %v399 = vpop.permute.xlu0 %398
  %vm400 = vcmp.lt.s32.totalorder %v23, 16
  %v401 = vsel %vm400, %v397, %v399
  %v402 = vsel %vm400, %v395, %v397
  %v403 = vsel %vm400, %v393, %v395
  %v404 = vsel %vm400, %v399, %v393
  %v405 = vsel %vm187, 1, 0
  %v406 = vsel %vm188, 1, 0
  %v407 = vsel %vm189, 1, 0
  %v408 = vsel %vm190, 1, 0
  %vm409 = vcmp.eq.s32.totalorder %v405, 1
  %vm410 = vcmp.eq.s32.totalorder %v406, 1
  %vm411 = vcmp.eq.s32.totalorder %v407, 1
  %vm412 = vcmp.eq.s32.totalorder %v408, 1
  %v413 = vsel %vm409, %v404, 0.0
  %v414 = vsel %vm410, %v403, 0.0
  %v415 = vsel %vm411, %v402, 0.0
  %v416 = vsel %vm412, %v401, 0.0
  %417 = vrot.lane.b32.xlu0 %v18, 15
  %v418 = vpop.permute.xlu0 %417
  %419 = vrot.lane.b32.xlu0 %v19, 15
  %v420 = vpop.permute.xlu0 %419
  %421 = vrot.lane.b32.xlu0 %v20, 15
  %v422 = vpop.permute.xlu0 %421
  %423 = vrot.lane.b32.xlu0 %v21, 15
  %v424 = vpop.permute.xlu0 %423
  %vm425 = vcmp.lt.s32.totalorder %v23, 15
  %v426 = vsel %vm425, %v422, %v424
  %v427 = vsel %vm425, %v420, %v422
  %v428 = vsel %vm425, %v418, %v420
  %v429 = vsel %vm425, %v424, %v418
  %v430 = vsel %vm223, 1, 0
  %v431 = vsel %vm224, 1, 0
  %v432 = vsel %vm225, 1, 0
  %v433 = vsel %vm226, 1, 0
  %vm434 = vcmp.eq.s32.totalorder %v430, 1
  %vm435 = vcmp.eq.s32.totalorder %v431, 1
  %vm436 = vcmp.eq.s32.totalorder %v432, 1
  %vm437 = vcmp.eq.s32.totalorder %v433, 1
  %v438 = vsel %vm434, %v429, 0.0
  %v439 = vsel %vm435, %v428, 0.0
  %v440 = vsel %vm436, %v427, 0.0
  %v441 = vsel %vm437, %v426, 0.0
  %442 = vrot.lane.b32.xlu0 %v18, 1
  %v443 = vpop.permute.xlu0 %442
  %444 = vrot.lane.b32.xlu0 %v19, 1
  %v445 = vpop.permute.xlu0 %444
  %446 = vrot.lane.b32.xlu0 %v20, 1
  %v447 = vpop.permute.xlu0 %446
  %448 = vrot.lane.b32.xlu0 %v21, 1
  %v449 = vpop.permute.xlu0 %448
  %vm450 = vcmp.lt.s32.totalorder %v23, 1
  %v451 = vsel %vm450, %v447, %v449
  %v452 = vsel %vm450, %v445, %v447
  %v453 = vsel %vm450, %v443, %v445
  %v454 = vsel %vm450, %v449, %v443
  %v455 = vsel %vm247, 1, 0
  %v456 = vsel %vm248, 1, 0
  %v457 = vsel %vm249, 1, 0
  %v458 = vsel %vm250, 1, 0
  %vm459 = vcmp.eq.s32.totalorder %v455, 1
  %vm460 = vcmp.eq.s32.totalorder %v456, 1
  %vm461 = vcmp.eq.s32.totalorder %v457, 1
  %vm462 = vcmp.eq.s32.totalorder %v458, 1
  %v463 = vsel %vm459, %v454, 0.0
  %v464 = vsel %vm460, %v453, 0.0
  %v465 = vsel %vm461, %v452, 0.0
  %v466 = vsel %vm462, %v451, 0.0
  %v467 = vsel %vm267, 1, 0
  %v468 = vsel %vm268, 1, 0
  %v469 = vsel %vm269, 1, 0
  %v470 = vsel %vm270, 1, 0
  %vm471 = vcmp.eq.s32.totalorder %v467, 1
  %vm472 = vcmp.eq.s32.totalorder %v468, 1
  %vm473 = vcmp.eq.s32.totalorder %v469, 1
  %vm474 = vcmp.eq.s32.totalorder %v470, 1
  %v475 = vsel %vm471, %v18, 0.0
  %v476 = vsel %vm472, %v19, 0.0
  %v477 = vsel %vm473, %v20, 0.0
  %v478 = vsel %vm474, %v21, 0.0
  %479 = vrot.lane.b32.xlu0 %v18, 127
  %v480 = vpop.permute.xlu0 %479
  %481 = vrot.lane.b32.xlu0 %v19, 127
  %v482 = vpop.permute.xlu0 %481
  %483 = vrot.lane.b32.xlu0 %v20, 127
  %v484 = vpop.permute.xlu0 %483
  %485 = vrot.lane.b32.xlu0 %v21, 127
  %v486 = vpop.permute.xlu0 %485
  %vm487 = vcmp.lt.s32.totalorder %v23, 127
  %v488 = vsel %vm487, %v484, %v486
  %v489 = vsel %vm487, %v482, %v484
  %v490 = vsel %vm487, %v480, %v482
  %v491 = vsel %vm487, %v486, %v480
  %v492 = vsel %vm291, 1, 0
  %v493 = vsel %vm292, 1, 0
  %v494 = vsel %vm293, 1, 0
  %v495 = vsel %vm294, 1, 0
  %vm496 = vcmp.eq.s32.totalorder %v492, 1
  %vm497 = vcmp.eq.s32.totalorder %v493, 1
  %vm498 = vcmp.eq.s32.totalorder %v494, 1
  %vm499 = vcmp.eq.s32.totalorder %v495, 1
  %v500 = vsel %vm496, %v490, 0.0
  %v501 = vsel %vm497, %v489, 0.0
  %v502 = vsel %vm498, %v488, 0.0
  %v503 = vsel %vm499, %v491, 0.0
  %504 = vrot.lane.b32.xlu0 %v18, 113
  %v505 = vpop.permute.xlu0 %504
  %506 = vrot.lane.b32.xlu0 %v19, 113
  %v507 = vpop.permute.xlu0 %506
  %508 = vrot.lane.b32.xlu0 %v20, 113
  %v509 = vpop.permute.xlu0 %508
  %510 = vrot.lane.b32.xlu0 %v21, 113
  %v511 = vpop.permute.xlu0 %510
  %vm512 = vcmp.lt.s32.totalorder %v23, 113
  %v513 = vsel %vm512, %v509, %v511
  %v514 = vsel %vm512, %v507, %v509
  %v515 = vsel %vm512, %v505, %v507
  %v516 = vsel %vm512, %v511, %v505
  %v517 = vsel %vm315, 1, 0
  %v518 = vsel %vm316, 1, 0
  %v519 = vsel %vm317, 1, 0
  %v520 = vsel %vm318, 1, 0
  %vm521 = vcmp.eq.s32.totalorder %v517, 1
  %vm522 = vcmp.eq.s32.totalorder %v518, 1
  %vm523 = vcmp.eq.s32.totalorder %v519, 1
  %vm524 = vcmp.eq.s32.totalorder %v520, 1
  %v525 = vsel %vm521, %v515, 0.0
  %v526 = vsel %vm522, %v514, 0.0
  %v527 = vsel %vm523, %v513, 0.0
  %v528 = vsel %vm524, %v516, 0.0
  %529 = vrot.lane.b32.xlu0 %v18, 112
  %v530 = vpop.permute.xlu0 %529
  %531 = vrot.lane.b32.xlu0 %v19, 112
  %v532 = vpop.permute.xlu0 %531
  %533 = vrot.lane.b32.xlu0 %v20, 112
  %v534 = vpop.permute.xlu0 %533
  %535 = vrot.lane.b32.xlu0 %v21, 112
  %v536 = vpop.permute.xlu0 %535
  %vm537 = vcmp.lt.s32.totalorder %v23, 112
  %v538 = vsel %vm537, %v534, %v536
  %v539 = vsel %vm537, %v532, %v534
  %v540 = vsel %vm537, %v530, %v532
  %v541 = vsel %vm537, %v536, %v530
  %v542 = vsel %vm339, 1, 0
  %v543 = vsel %vm340, 1, 0
  %v544 = vsel %vm341, 1, 0
  %v545 = vsel %vm342, 1, 0
  %vm546 = vcmp.eq.s32.totalorder %v542, 1
  %vm547 = vcmp.eq.s32.totalorder %v543, 1
  %vm548 = vcmp.eq.s32.totalorder %v544, 1
  %vm549 = vcmp.eq.s32.totalorder %v545, 1
  %v550 = vsel %vm546, %v540, 0.0
  %v551 = vsel %vm547, %v539, 0.0
  %v552 = vsel %vm548, %v538, 0.0
  %v553 = vsel %vm549, %v541, 0.0
  %554 = vrot.lane.b32.xlu0 %v18, 111
  %v555 = vpop.permute.xlu0 %554
  %556 = vrot.lane.b32.xlu0 %v19, 111
  %v557 = vpop.permute.xlu0 %556
  %558 = vrot.lane.b32.xlu0 %v20, 111
  %v559 = vpop.permute.xlu0 %558
  %560 = vrot.lane.b32.xlu0 %v21, 111
  %v561 = vpop.permute.xlu0 %560
  %vm562 = vcmp.lt.s32.totalorder %v23, 111
  %v563 = vsel %vm562, %v559, %v561
  %v564 = vsel %vm562, %v557, %v559
  %v565 = vsel %vm562, %v555, %v557
  %v566 = vsel %vm562, %v561, %v555
  %v567 = vsel %vm363, 1, 0
  %v568 = vsel %vm364, 1, 0
  %v569 = vsel %vm365, 1, 0
  %v570 = vsel %vm366, 1, 0
  %vm571 = vcmp.eq.s32.totalorder %v567, 1
  %vm572 = vcmp.eq.s32.totalorder %v568, 1
  %vm573 = vcmp.eq.s32.totalorder %v569, 1
  %vm574 = vcmp.eq.s32.totalorder %v570, 1
  %v575 = vsel %vm571, %v565, 0.0
  %v576 = vsel %vm572, %v564, 0.0
  %v577 = vsel %vm573, %v563, 0.0
  %v578 = vsel %vm574, %v566, 0.0
  %v579 = vpack.c.bf16 %v413, %v388
  %v580 = vpack.c.bf16 %v414, %v389
  %v581 = vpack.c.bf16 %v415, %v390
  %v582 = vpack.c.bf16 %v416, %v391
  %v583 = vpack.c.bf16 %v463, %v438
  %v584 = vpack.c.bf16 %v464, %v439
  %v585 = vpack.c.bf16 %v465, %v440
  %v586 = vpack.c.bf16 %v466, %v441
  %v587 = vpack.c.bf16 %v500, %v475
  %v588 = vpack.c.bf16 %v501, %v476
  %v589 = vpack.c.bf16 %v502, %v477
  %v590 = vpack.c.bf16 %v503, %v478
  %v591 = vpack.c.bf16 %v550, %v525
  %v592 = vpack.c.bf16 %v551, %v526
  %v593 = vpack.c.bf16 %v552, %v527
  %v594 = vpack.c.bf16 %v553, %v528
  %v595 = vpack.c.bf16 %v575, %v575
  %v596 = vpack.c.bf16 %v576, %v576
  %v597 = vpack.c.bf16 %v577, %v577
  %v598 = vpack.c.bf16 %v578, %v578
  %v599 = vld [vmem:[%s1] sm:$0xf]
  %v600 = vld [vmem:[%s1 + $0x4] sm:$0x3]
  %v601 = vld [vmem:[%s2] sm:$0xff]
  %v602 = vld [vmem:[%s2 + $0x8] sm:$0xf]
  %604 = vset.pattern.permute.xlu0 0
  %605 = vperm.xlu0 %604, %v601
  %v606 = vpop.permute.xlu0 %605
  %609 = vset.pattern.permute.xlu0 0
  %610 = vperm.xlu0 %609, %v602
  %v611 = vpop.permute.xlu0 %610
  %v615 = vunpack.c.l.b16 %v599
  %v616 = vunpack.c.l.b16 %v600
  %v617 = vpack.c.b16 %v616, %v615
  %vm618 = vcmask 588800
  %v620 = vsel %vm618, %v617, 0
  %vm622 = vcmask 1043456
  %v624 = vsel %vm622, %v595, 0
  %v627 = vsel %vm622, %v596, 0
  %v630 = vsel %vm622, %v597, 0
  %v633 = vsel %vm622, %v598, 0
  %635 = vmatpush.bf16.msra.mxu0 0
  %636 = vmatpush.bf16.msra.mxu0 0
  %637 = vmatpush.bf16.msra.mxu0 0
  %638 = vmatpush.bf16.msra.mxu0 %v624
  %639 = vmatpush.bf16.msra.mxu0 %v591
  %640 = vmatpush.bf16.msra.mxu0 %v587
  %641 = vmatpush.bf16.msra.mxu0 %v583
  %642 = vmatpush.bf16.msra.mxu0 %v579
  %643 = vmatmul.bf16.gmra.mxu0 %v620
  %v644 = vpop.f32.mrf.mxu0
  %v645 = vadd.f32 %v606, %v644
  %v646 = vpop.f32.mrf.mxu0
  %v647 = vadd.f32 %v611, %v646
  %648 = vdwg.mxu0
  %649 = vmatpush.bf16.msra.mxu0 0
  %650 = vmatpush.bf16.msra.mxu0 0
  %651 = vmatpush.bf16.msra.mxu0 0
  %652 = vmatpush.bf16.msra.mxu0 %v627
  %653 = vmatpush.bf16.msra.mxu0 %v592
  %654 = vmatpush.bf16.msra.mxu0 %v588
  %655 = vmatpush.bf16.msra.mxu0 %v584
  %656 = vmatpush.bf16.msra.mxu0 %v580
  %657 = vmatmul.bf16.gmra.mxu0 %v620
  %v658 = vpop.f32.mrf.mxu0
  %v659 = vadd.f32 %v606, %v658
  %v660 = vpop.f32.mrf.mxu0
  %v661 = vadd.f32 %v611, %v660
  %662 = vdwg.mxu0
  %663 = vmatpush.bf16.msra.mxu0 0
  %664 = vmatpush.bf16.msra.mxu0 0
  %665 = vmatpush.bf16.msra.mxu0 0
  %666 = vmatpush.bf16.msra.mxu0 %v630
  %667 = vmatpush.bf16.msra.mxu0 %v593
  %668 = vmatpush.bf16.msra.mxu0 %v589
  %669 = vmatpush.bf16.msra.mxu0 %v585
  %670 = vmatpush.bf16.msra.mxu0 %v581
  %671 = vmatmul.bf16.gmra.mxu0 %v620
  %v672 = vpop.f32.mrf.mxu0
  %v673 = vadd.f32 %v606, %v672
  %v674 = vpop.f32.mrf.mxu0
  %v675 = vadd.f32 %v611, %v674
  %676 = vdwg.mxu0
  %677 = vmatpush.bf16.msra.mxu0 0
  %678 = vmatpush.bf16.msra.mxu0 0
  %679 = vmatpush.bf16.msra.mxu0 0
  %680 = vmatpush.bf16.msra.mxu0 %v633
  %681 = vmatpush.bf16.msra.mxu0 %v594
  %682 = vmatpush.bf16.msra.mxu0 %v590
  %683 = vmatpush.bf16.msra.mxu0 %v586
  %684 = vmatpush.bf16.msra.mxu0 %v582
  %685 = vmatmul.bf16.gmra.mxu0 %v620
  %v686 = vpop.f32.mrf.mxu0
  %v687 = vadd.f32 %v606, %v686
  %v688 = vpop.f32.mrf.mxu0
  %v689 = vadd.f32 %v611, %v688
  %690 = vdwg.mxu0
  %v691 = vsub.f32 0.0, %v645
  %v692 = vsub.f32 0.0, %v659
  %v693 = vsub.f32 0.0, %v673
  %v694 = vsub.f32 0.0, %v687
  %v695 = vmul.f32 %v691, 1.442695
  %v696 = vpow.pop %v695
  %v697 = vmul.f32 %v692, 1.442695
  %v698 = vpow.pop %v697
  %v699 = vmul.f32 %v693, 1.442695
  %v700 = vpow.pop %v699
  %v701 = vmul.f32 %v694, 1.442695
  %v702 = vpow.pop %v701
  %v703 = vadd.f32 %v696, 1.0
  %v704 = vadd.f32 %v698, 1.0
  %v705 = vadd.f32 %v700, 1.0
  %v706 = vadd.f32 %v702, 1.0
  %v707 = vrcp.pop %v703
  %v708 = vrcp.pop %v704
  %v709 = vrcp.pop %v705
  %v710 = vrcp.pop %v706
  %v711 = vmul.f32 %v645, %v707
  %v712 = vmul.f32 %v659, %v708
  %v713 = vmul.f32 %v673, %v709
  %v714 = vmul.f32 %v687, %v710
  %715 = vrot.lane.b32.xlu0 %v711, 17
  %v716 = vpop.permute.xlu0 %715
  %717 = vrot.lane.b32.xlu0 %v712, 17
  %v718 = vpop.permute.xlu0 %717
  %719 = vrot.lane.b32.xlu0 %v713, 17
  %v720 = vpop.permute.xlu0 %719
  %721 = vrot.lane.b32.xlu0 %v714, 17
  %v722 = vpop.permute.xlu0 %721
  %v723 = vsel %vm375, %v720, %v722
  %v724 = vsel %vm375, %v718, %v720
  %v725 = vsel %vm375, %v716, %v718
  %v726 = vsel %vm375, %v722, %v716
  %v727 = vsel %vm384, %v726, 0.0
  %v728 = vsel %vm385, %v725, 0.0
  %v729 = vsel %vm386, %v724, 0.0
  %v730 = vsel %vm387, %v723, 0.0
  %731 = vrot.lane.b32.xlu0 %v711, 16
  %v732 = vpop.permute.xlu0 %731
  %733 = vrot.lane.b32.xlu0 %v712, 16
  %v734 = vpop.permute.xlu0 %733
  %735 = vrot.lane.b32.xlu0 %v713, 16
  %v736 = vpop.permute.xlu0 %735
  %737 = vrot.lane.b32.xlu0 %v714, 16
  %v738 = vpop.permute.xlu0 %737
  %v739 = vsel %vm400, %v736, %v738
  %v740 = vsel %vm400, %v734, %v736
  %v741 = vsel %vm400, %v732, %v734
  %v742 = vsel %vm400, %v738, %v732
  %v743 = vsel %vm409, %v742, 0.0
  %v744 = vsel %vm410, %v741, 0.0
  %v745 = vsel %vm411, %v740, 0.0
  %v746 = vsel %vm412, %v739, 0.0
  %747 = vrot.lane.b32.xlu0 %v711, 15
  %v748 = vpop.permute.xlu0 %747
  %749 = vrot.lane.b32.xlu0 %v712, 15
  %v750 = vpop.permute.xlu0 %749
  %751 = vrot.lane.b32.xlu0 %v713, 15
  %v752 = vpop.permute.xlu0 %751
  %753 = vrot.lane.b32.xlu0 %v714, 15
  %v754 = vpop.permute.xlu0 %753
  %v755 = vsel %vm425, %v752, %v754
  %v756 = vsel %vm425, %v750, %v752
  %v757 = vsel %vm425, %v748, %v750
  %v758 = vsel %vm425, %v754, %v748
  %v759 = vsel %vm434, %v758, 0.0
  %v760 = vsel %vm435, %v757, 0.0
  %v761 = vsel %vm436, %v756, 0.0
  %v762 = vsel %vm437, %v755, 0.0
  %763 = vrot.lane.b32.xlu0 %v711, 1
  %v764 = vpop.permute.xlu0 %763
  %765 = vrot.lane.b32.xlu0 %v712, 1
  %v766 = vpop.permute.xlu0 %765
  %767 = vrot.lane.b32.xlu0 %v713, 1
  %v768 = vpop.permute.xlu0 %767
  %769 = vrot.lane.b32.xlu0 %v714, 1
  %v770 = vpop.permute.xlu0 %769
  %v771 = vsel %vm450, %v768, %v770
  %v772 = vsel %vm450, %v766, %v768
  %v773 = vsel %vm450, %v764, %v766
  %v774 = vsel %vm450, %v770, %v764
  %v775 = vsel %vm459, %v774, 0.0
  %v776 = vsel %vm460, %v773, 0.0
  %v777 = vsel %vm461, %v772, 0.0
  %v778 = vsel %vm462, %v771, 0.0
  %v779 = vsel %vm471, %v711, 0.0
  %v780 = vsel %vm472, %v712, 0.0
  %v781 = vsel %vm473, %v713, 0.0
  %v782 = vsel %vm474, %v714, 0.0
  %783 = vrot.lane.b32.xlu0 %v711, 127
  %v784 = vpop.permute.xlu0 %783
  %785 = vrot.lane.b32.xlu0 %v712, 127
  %v786 = vpop.permute.xlu0 %785
  %787 = vrot.lane.b32.xlu0 %v713, 127
  %v788 = vpop.permute.xlu0 %787
  %789 = vrot.lane.b32.xlu0 %v714, 127
  %v790 = vpop.permute.xlu0 %789
  %v791 = vsel %vm487, %v788, %v790
  %v792 = vsel %vm487, %v786, %v788
  %v793 = vsel %vm487, %v784, %v786
  %v794 = vsel %vm487, %v790, %v784
  %v795 = vsel %vm496, %v793, 0.0
  %v796 = vsel %vm497, %v792, 0.0
  %v797 = vsel %vm498, %v791, 0.0
  %v798 = vsel %vm499, %v794, 0.0
  %799 = vrot.lane.b32.xlu0 %v711, 113
  %v800 = vpop.permute.xlu0 %799
  %801 = vrot.lane.b32.xlu0 %v712, 113
  %v802 = vpop.permute.xlu0 %801
  %803 = vrot.lane.b32.xlu0 %v713, 113
  %v804 = vpop.permute.xlu0 %803
  %805 = vrot.lane.b32.xlu0 %v714, 113
  %v806 = vpop.permute.xlu0 %805
  %v807 = vsel %vm512, %v804, %v806
  %v808 = vsel %vm512, %v802, %v804
  %v809 = vsel %vm512, %v800, %v802
  %v810 = vsel %vm512, %v806, %v800
  %v811 = vsel %vm521, %v809, 0.0
  %v812 = vsel %vm522, %v808, 0.0
  %v813 = vsel %vm523, %v807, 0.0
  %v814 = vsel %vm524, %v810, 0.0
  %815 = vrot.lane.b32.xlu0 %v711, 112
  %v816 = vpop.permute.xlu0 %815
  %817 = vrot.lane.b32.xlu0 %v712, 112
  %v818 = vpop.permute.xlu0 %817
  %819 = vrot.lane.b32.xlu0 %v713, 112
  %v820 = vpop.permute.xlu0 %819
  %821 = vrot.lane.b32.xlu0 %v714, 112
  %v822 = vpop.permute.xlu0 %821
  %v823 = vsel %vm537, %v820, %v822
  %v824 = vsel %vm537, %v818, %v820
  %v825 = vsel %vm537, %v816, %v818
  %v826 = vsel %vm537, %v822, %v816
  %v827 = vsel %vm546, %v825, 0.0
  %v828 = vsel %vm547, %v824, 0.0
  %v829 = vsel %vm548, %v823, 0.0
  %v830 = vsel %vm549, %v826, 0.0
  %831 = vrot.lane.b32.xlu0 %v711, 111
  %v832 = vpop.permute.xlu0 %831
  %833 = vrot.lane.b32.xlu0 %v712, 111
  %v834 = vpop.permute.xlu0 %833
  %835 = vrot.lane.b32.xlu0 %v713, 111
  %v836 = vpop.permute.xlu0 %835
  %837 = vrot.lane.b32.xlu0 %v714, 111
  %v838 = vpop.permute.xlu0 %837
  %v839 = vsel %vm562, %v836, %v838
  %v840 = vsel %vm562, %v834, %v836
  %v841 = vsel %vm562, %v832, %v834
  %v842 = vsel %vm562, %v838, %v832
  %v843 = vsel %vm571, %v841, 0.0
  %v844 = vsel %vm572, %v840, 0.0
  %v845 = vsel %vm573, %v839, 0.0
  %v846 = vsel %vm574, %v842, 0.0
  %v847 = vpack.c.bf16 %v743, %v727
  %v848 = vpack.c.bf16 %v744, %v728
  %v849 = vpack.c.bf16 %v745, %v729
  %v850 = vpack.c.bf16 %v746, %v730
  %v851 = vpack.c.bf16 %v775, %v759
  %v852 = vpack.c.bf16 %v776, %v760
  %v853 = vpack.c.bf16 %v777, %v761
  %v854 = vpack.c.bf16 %v778, %v762
  %v855 = vpack.c.bf16 %v795, %v779
  %v856 = vpack.c.bf16 %v796, %v780
  %v857 = vpack.c.bf16 %v797, %v781
  %v858 = vpack.c.bf16 %v798, %v782
  %v859 = vpack.c.bf16 %v827, %v811
  %v860 = vpack.c.bf16 %v828, %v812
  %v861 = vpack.c.bf16 %v829, %v813
  %v862 = vpack.c.bf16 %v830, %v814
  %v863 = vpack.c.bf16 %v843, %v843
  %v864 = vpack.c.bf16 %v844, %v844
  %v865 = vpack.c.bf16 %v845, %v845
  %v866 = vpack.c.bf16 %v846, %v846
  %v867 = vld [vmem:[%s3] sm:$0x3]
  %v869 = vsel %vm618, %v867, 0
  %v872 = vsel %vm622, %v863, 0
  %v875 = vsel %vm622, %v864, 0
  %v878 = vsel %vm622, %v865, 0
  %v881 = vsel %vm622, %v866, 0
  %883 = vmatpush.bf16.msra.mxu0 0
  %884 = vmatpush.bf16.msra.mxu0 0
  %885 = vmatpush.bf16.msra.mxu0 0
  %886 = vmatpush.bf16.msra.mxu0 %v872
  %887 = vmatpush.bf16.msra.mxu0 %v859
  %888 = vmatpush.bf16.msra.mxu0 %v855
  %889 = vmatpush.bf16.msra.mxu0 %v851
  %890 = vmatpush.bf16.msra.mxu0 %v847
  %891 = vmatmul.bf16.gmra.mxu0 %v869
  %v892 = vpop.f32.mrf.mxu0
  %v893 = vadd.f32 0.0, %v892
  %v894 = vpop.f32.mrf.mxu0
  %895 = vdwg.mxu0
  %896 = vmatpush.bf16.msra.mxu0 0
  %897 = vmatpush.bf16.msra.mxu0 0
  %898 = vmatpush.bf16.msra.mxu0 0
  %899 = vmatpush.bf16.msra.mxu0 %v875
  %900 = vmatpush.bf16.msra.mxu0 %v860
  %901 = vmatpush.bf16.msra.mxu0 %v856
  %902 = vmatpush.bf16.msra.mxu0 %v852
  %903 = vmatpush.bf16.msra.mxu0 %v848
  %904 = vmatmul.bf16.gmra.mxu0 %v869
  %v905 = vpop.f32.mrf.mxu0
  %v906 = vadd.f32 0.0, %v905
  %v907 = vpop.f32.mrf.mxu0
  %908 = vdwg.mxu0
  %909 = vmatpush.bf16.msra.mxu0 0
  %910 = vmatpush.bf16.msra.mxu0 0
  %911 = vmatpush.bf16.msra.mxu0 0
  %912 = vmatpush.bf16.msra.mxu0 %v878
  %913 = vmatpush.bf16.msra.mxu0 %v861
  %914 = vmatpush.bf16.msra.mxu0 %v857
  %915 = vmatpush.bf16.msra.mxu0 %v853
  %916 = vmatpush.bf16.msra.mxu0 %v849
  %917 = vmatmul.bf16.gmra.mxu0 %v869
  %v918 = vpop.f32.mrf.mxu0
  %v919 = vadd.f32 0.0, %v918
  %v920 = vpop.f32.mrf.mxu0
  %921 = vdwg.mxu0
  %922 = vmatpush.bf16.msra.mxu0 0
  %923 = vmatpush.bf16.msra.mxu0 0
  %924 = vmatpush.bf16.msra.mxu0 0
  %925 = vmatpush.bf16.msra.mxu0 %v881
  %926 = vmatpush.bf16.msra.mxu0 %v862
  %927 = vmatpush.bf16.msra.mxu0 %v858
  %928 = vmatpush.bf16.msra.mxu0 %v854
  %929 = vmatpush.bf16.msra.mxu0 %v850
  %930 = vmatmul.bf16.gmra.mxu0 %v869
  %v931 = vpop.f32.mrf.mxu0
  %v932 = vadd.f32 0.0, %v931
  %v933 = vpop.f32.mrf.mxu0
  %934 = vdwg.mxu0
  %v935 = vadd.f32 %v647, %v893
  %v936 = vadd.f32 %v661, %v906
  %v937 = vadd.f32 %v675, %v919
  %v938 = vadd.f32 %v689, %v932
  %v939 = vsub.f32 0.0, %v935
  %v940 = vsub.f32 0.0, %v936
  %v941 = vsub.f32 0.0, %v937
  %v942 = vsub.f32 0.0, %v938
  %v943 = vmul.f32 %v939, 1.442695
  %v944 = vpow.pop %v943
  %v945 = vmul.f32 %v940, 1.442695
  %v946 = vpow.pop %v945
  %v947 = vmul.f32 %v941, 1.442695
  %v948 = vpow.pop %v947
  %v949 = vmul.f32 %v942, 1.442695
  %v950 = vpow.pop %v949
  %v951 = vadd.f32 %v944, 1.0
  %v952 = vadd.f32 %v946, 1.0
  %v953 = vadd.f32 %v948, 1.0
  %v954 = vadd.f32 %v950, 1.0
  %v955 = vrcp.pop %v951
  %v956 = vrcp.pop %v952
  %v957 = vrcp.pop %v953
  %v958 = vrcp.pop %v954
  %v959 = vmul.f32 %v935, %v955
  %v960 = vmul.f32 %v936, %v956
  %v961 = vmul.f32 %v937, %v957
  %v962 = vmul.f32 %v938, %v958
  %v967 = vrot.slane %v960, 4
  %v968 = vrot.slane %v962, 4
  %v969 = vsel %vm622, %v959, %v967
  %v970 = vsel %vm622, %v961, %v968
  %973 = vst [vmem:[%s4] sm:$0xff] %v969
  %974 = vst [vmem:[%s4 + $0x8] sm:$0xff] %v970
  // Predicated region
  $region18: #{dense_conv_forward.1} parent=0 // pred_check
    _
  $region19: #{dense_conv_forward.1} parent=0 // pred_check_branch
    %976 = sbr.rel (0) target = $region21
  $region20: #{dense_conv_forward.1} parent=0 // pred_region
    _
  $region21: #{dense_conv_forward.1} parent=0 // pred_fallthru
    _
  // Predicated region
  $region22: #{dense_conv_forward.1} parent=0 // pred_check
    _
  $region23: #{dense_conv_forward.1} parent=0 // pred_check_branch
    %978 = sbr.rel (0) target = $region25
  $region24: #{dense_conv_forward.1} parent=0 // pred_region
    _
  $region25: #{dense_conv_forward.1} parent=0 // pred_fallthru
    _

</llo_original>
